<compile_context>
chip_gen: v5e
topology: v5e:2x2
jax: 0.10.0
libtpu: 0.0.40
codegen_flags: <defaults>
</compile_context>

<pallas_src>
import jax
import jax.numpy as jnp
from jax import lax
from jax.experimental import pallas as pl
from jax.experimental.pallas import tpu as pltpu

BERT_DIM = 768
HIDDEN = 32          # GRU hidden size
NUM_COMMANDS = 8     # commands "batch" (== GRU sequence length for commands)
BATCH = 1            # state batch; must be 1 (module's concat requires it)

VMEM_SPEC = pl.BlockSpec(memory_space=pltpu.MemorySpace.VMEM)
SMEM_SPEC = pl.BlockSpec(memory_space=pltpu.MemorySpace.SMEM)


# ---------------------------------------------------------------------------
# Fused kernel: 4 GRUs + value head + scoring head + softmax + multinomial
# ---------------------------------------------------------------------------
def bert_gru_kernel(x_ref,                       # [3+C, 768] f32: obs|desc|inv|cmds CLS rows
                    w_in_ref,                    # [768, 12H]  bf16: packed W_ir|W_iz|W_in per GRU
                    b_in_ref,                    # [1, 12H]    f32: packed b_ir|b_iz|b_in per GRU
                    b_h_ref,                     # [1, 12H]    f32: packed b_hr|b_hz|b_hn per GRU
                    w_h_cmd_ref,                 # [H, 3H]     f32: commands GRU W_hr|W_hz|W_hn
                    w1s_ref, w1c_ref, b1_ref,    # [3H,50],[H,50],[1,50]
                    w2_ref, b2_ref,              # [50,1],[1,1]
                    wv_ref, bv_ref,              # [3H,1],[1,1]
                    u_ref,                       # SMEM (1,) f32 uniform sample
                    scores_ref,                  # [1, C] f32
                    value_ref,                   # [1, 1] f32
                    idx_ref,                     # SMEM (1,) int32
                    cmd_h_s):                    # VMEM scratch [C, H] f32
    H = w_h_cmd_ref.shape[0]
    C = x_ref.shape[0] - 3

    # --- one lane-dense input projection for all four GRUs (bf16 MXU, f32 acc)
    x_bf = x_ref[...].astype(jnp.bfloat16)
    x_proj = (jnp.dot(x_bf, w_in_ref[...], preferred_element_type=jnp.float32)
              + b_in_ref[...])                                           # [3+C, 12H]
    b_h = b_h_ref[...]                                                   # [1, 12H]

    def h0_step(row, base):
        # One GRU step with h_prev == 0:  Wh @ 0 vanishes, h' = (1 - z) * n.
        xr = x_proj[row:row + 1, base:base + H]
        xz = x_proj[row:row + 1, base + H:base + 2 * H]
        xn = x_proj[row:row + 1, base + 2 * H:base + 3 * H]
        r = jax.nn.sigmoid(xr + b_h[:, base:base + H])
        z = jax.nn.sigmoid(xz + b_h[:, base + H:base + 2 * H])
        n = jnp.tanh(xn + r * b_h[:, base + 2 * H:base + 3 * H])
        return (1.0 - z) * n

    h_obs = h0_step(0, 0)                                                # [1, H]
    h_desc = h0_step(1, 3 * H)
    h_inv = h0_step(2, 6 * H)

    # --- commands GRU: serial recurrence over the C command rows, fully
    #     unrolled (C static), ONE fused [1,H]@[H,3H] hidden matmul per step.
    cbase = 9 * H
    w_h = w_h_cmd_ref[...]                                               # [H, 3H]
    b_h_cmd = b_h[:, cbase:cbase + 3 * H]                                # [1, 3H]
    h = h0_step(3, cbase)                                                # step 0 (h0 == 0)
    cmd_h_s[0:1, :] = h
    for t in range(1, C):
        gx = x_proj[3 + t:4 + t, cbase:cbase + 3 * H]                    # [1, 3H]
        gh = jnp.dot(h, w_h, preferred_element_type=jnp.float32) + b_h_cmd
        r = jax.nn.sigmoid(gx[:, 0:H] + gh[:, 0:H])
        z = jax.nn.sigmoid(gx[:, H:2 * H] + gh[:, H:2 * H])
        n = jnp.tanh(gx[:, 2 * H:3 * H] + r * gh[:, 2 * H:3 * H])
        h = (1.0 - z) * n + z * h
        cmd_h_s[t:t + 1, :] = h
    cmd_h = cmd_h_s[...]                                                 # [C, H]

    # --- state encoding (concat done in-kernel)
    state_enc = jnp.concatenate([h_obs, h_desc, h_inv], axis=1)          # [1, 3H]

    # --- value = Linear(3H -> 1)(state_encoding)
    value_ref[...] = (jnp.dot(state_enc, wv_ref[...],
                              preferred_element_type=jnp.float32) + bv_ref[...])

    # --- command scoring head:
    # concat([state]*C, cmds) @ W1 == state@W1_state (broadcast) + cmds@W1_cmd
    hs = jnp.dot(state_enc, w1s_ref[...], preferred_element_type=jnp.float32)   # [1, 50]
    hc = jnp.dot(cmd_h, w1c_ref[...], preferred_element_type=jnp.float32)       # [C, 50]
    hidden = jnp.maximum(hs + hc + b1_ref[...], 0.0)                            # [C, 50]
    scores_col = (jnp.dot(hidden, w2_ref[...], preferred_element_type=jnp.float32)
                  + b2_ref[...])                                                # [C, 1]

    # lane-dense [1, C] scores row (diag extraction: broadcast * eye, sublane sum)
    row_i = lax.broadcasted_iota(jnp.int32, (C, C), 0)
    col_i = lax.broadcasted_iota(jnp.int32, (C, C), 1)
    eye = (row_i == col_i).astype(jnp.float32)
    scores_row = jnp.sum(scores_col * eye, axis=0, keepdims=True)               # [1, C]
    scores_ref[...] = scores_row

    # softmax over the C commands (lane-dim reduction), EUP reciprocal
    m = jnp.max(scores_row, axis=1, keepdims=True)
    e = jnp.exp(scores_row - m)
    probs = e * pl.reciprocal(jnp.sum(e, axis=1, keepdims=True), approx=True)   # [1, C]

    # multinomial(num_samples=1): smallest i with u < inclusive-cumsum(probs)[i]
    upper = (row_i <= col_i).astype(jnp.float32)                                # [C, C]
    cum = jnp.dot(probs, upper, preferred_element_type=jnp.float32)             # [1, C]
    u = u_ref[0]
    idx = jnp.sum((cum <= u).astype(jnp.int32))
    idx_ref[0] = jnp.minimum(idx, C - 1)


def bert_gru_pallas(x_all, packed, u):
    (w_in_all, b_in_all, b_h_all, w_h_cmd,
     w1s, w1c, b1, w2, b2, wv, bv) = packed
    C = x_all.shape[0] - 3
    H = w_h_cmd.shape[0]
    out_shapes = (
        jax.ShapeDtypeStruct((1, C), jnp.float32),   # scores (lane-dense row)
        jax.ShapeDtypeStruct((1, 1), jnp.float32),   # value
        jax.ShapeDtypeStruct((1,), jnp.int32),       # sampled index
    )
    return pl.pallas_call(
        bert_gru_kernel,
        out_shape=out_shapes,
        in_specs=[VMEM_SPEC] * 12 + [SMEM_SPEC],
        out_specs=(VMEM_SPEC, VMEM_SPEC, SMEM_SPEC),
        scratch_shapes=[pltpu.VMEM((C, H), jnp.float32)],
    )(x_all, w_in_all, b_in_all, b_h_all, w_h_cmd,
      w1s, w1c, b1, w2, b2, wv, bv, u)


# ---------------------------------------------------------------------------
# Deterministic parameter initialization (shapes follow the PyTorch module)
# ---------------------------------------------------------------------------
def _uniform(key, shape, scale):
    return jax.random.uniform(key, shape, jnp.float32, -scale, scale)


def init_gru_params(key, input_size, hidden_size):
    keys = jax.random.split(key, 12)
    s = 1.0 / float(hidden_size) ** 0.5
    wir = _uniform(keys[0], (input_size, hidden_size), s)
    wiz = _uniform(keys[1], (input_size, hidden_size), s)
    win = _uniform(keys[2], (input_size, hidden_size), s)
    whr = _uniform(keys[3], (hidden_size, hidden_size), s)
    whz = _uniform(keys[4], (hidden_size, hidden_size), s)
    whn = _uniform(keys[5], (hidden_size, hidden_size), s)
    bir = _uniform(keys[6], (1, hidden_size), s)
    biz = _uniform(keys[7], (1, hidden_size), s)
    bin_ = _uniform(keys[8], (1, hidden_size), s)
    bhr = _uniform(keys[9], (1, hidden_size), s)
    bhz = _uniform(keys[10], (1, hidden_size), s)
    bhn = _uniform(keys[11], (1, hidden_size), s)
    return (wir, wiz, win, whr, whz, whn, bir, biz, bin_, bhr, bhz, bhn)


def init_head_params(key, hidden_size):
    keys = jax.random.split(key, 6)
    s1 = 1.0 / float(4 * hidden_size) ** 0.5
    s2 = 1.0 / float(50) ** 0.5
    sv = 1.0 / float(3 * hidden_size) ** 0.5
    w1s = _uniform(keys[0], (3 * hidden_size, 50), s1)   # linear1_command (state part)
    w1c = _uniform(keys[1], (hidden_size, 50), s1)       # linear1_command (command part)
    b1 = _uniform(keys[2], (1, 50), s1)
    w2 = _uniform(keys[3], (50, 1), s2)                  # linear2_command
    b2 = _uniform(keys[4], (1, 1), s2)
    wv = _uniform(keys[5], (3 * hidden_size, 1), sv)     # linear_value
    bv = jnp.zeros((1, 1), jnp.float32)
    return (w1s, w1c, b1, w2, b2, wv, bv)


def pack_params(gru_obs, gru_desc, gru_inv, gru_cmd, head_params):
    """Pack per-GRU weights into the lane-dense fused layout (done once)."""
    grus = (gru_obs, gru_desc, gru_inv, gru_cmd)
    # columns per GRU: [W_ir | W_iz | W_in]  ->  [768, 12H] (bf16: halves weight DMA)
    w_in_all = jnp.concatenate(
        [jnp.concatenate([p[0], p[1], p[2]], axis=1) for p in grus],
        axis=1).astype(jnp.bfloat16)
    b_in_all = jnp.concatenate(
        [jnp.concatenate([p[6], p[7], p[8]], axis=1) for p in grus], axis=1)
    b_h_all = jnp.concatenate(
        [jnp.concatenate([p[9], p[10], p[11]], axis=1) for p in grus], axis=1)
    # commands GRU hidden weights [H, 3H]; the h0==0 GRUs never need theirs.
    w_h_cmd = jnp.concatenate([gru_cmd[3], gru_cmd[4], gru_cmd[5]], axis=1)
    w1s, w1c, b1, w2, b2, wv, bv = head_params
    return (w_in_all, b_in_all, b_h_all, w_h_cmd, w1s, w1c, b1, w2, b2, wv, bv)


# ---------------------------------------------------------------------------
# Full forward pass (DistilBERT CLS embeddings supplied as inputs)
# ---------------------------------------------------------------------------
def bert_gru_forward(obs_cls, desc_cls, inv_cls, cmd_cls, packed, u):
    num_commands = cmd_cls.shape[0]
    # stack all CLS rows: [obs; desc; inv; commands]  ->  [3+C, 768]
    x_all = jnp.concatenate([obs_cls, desc_cls, inv_cls, cmd_cls], axis=0)
    scores, value, idx = bert_gru_pallas(x_all, packed, u)
    # match PyTorch output shapes: scores [1,1,C], index [1,1,1], value [1,B,1]
    scores_out = scores.reshape(1, 1, num_commands)
    index_out = idx.reshape(1, 1, 1)
    value_out = value.reshape(1, BATCH, 1)
    return scores_out, index_out, value_out


if __name__ == "__main__":
    root = jax.random.PRNGKey(0)
    k_in, k_obs, k_desc, k_inv, k_cmd, k_head, k_u = jax.random.split(root, 7)

    # stand-ins for DistilBERT [CLS] embeddings
    ki = jax.random.split(k_in, 4)
    obs_cls = jax.random.normal(ki[0], (BATCH, BERT_DIM), jnp.float32)
    desc_cls = jax.random.normal(ki[1], (BATCH, BERT_DIM), jnp.float32)
    inv_cls = jax.random.normal(ki[2], (BATCH, BERT_DIM), jnp.float32)
    cmd_cls = jax.random.normal(ki[3], (NUM_COMMANDS, BERT_DIM), jnp.float32)

    gru_obs = init_gru_params(k_obs, BERT_DIM, HIDDEN)
    gru_desc = init_gru_params(k_desc, BERT_DIM, HIDDEN)
    gru_inv = init_gru_params(k_inv, BERT_DIM, HIDDEN)
    gru_cmd = init_gru_params(k_cmd, BERT_DIM, HIDDEN)
    head_params = init_head_params(k_head, HIDDEN)
    packed = pack_params(gru_obs, gru_desc, gru_inv, gru_cmd, head_params)

    # uniform sample used by the in-kernel multinomial draw
    u = jax.random.uniform(k_u, (1,), jnp.float32)

    scores, index, value = bert_gru_forward(
        obs_cls, desc_cls, inv_cls, cmd_cls, packed, u)
    jax.block_until_ready((scores, index, value))

    assert scores.shape == (1, 1, NUM_COMMANDS)
    assert index.shape == (1, 1, 1)
    assert value.shape == (1, BATCH, 1)
    print("KERNEL_OK")
</pallas_src>

<mosaic_0001>
module attributes {stable_mosaic.version = 11 : i64} {
  func.func @bert_gru_kernel(%arg0: memref<11x768xf32, #tpu.memory_space<vmem>>, %arg1: memref<768x384xbf16, #tpu.memory_space<vmem>>, %arg2: memref<1x384xf32, #tpu.memory_space<vmem>>, %arg3: memref<1x384xf32, #tpu.memory_space<vmem>>, %arg4: memref<32x96xf32, #tpu.memory_space<vmem>>, %arg5: memref<96x50xf32, #tpu.memory_space<vmem>>, %arg6: memref<32x50xf32, #tpu.memory_space<vmem>>, %arg7: memref<1x50xf32, #tpu.memory_space<vmem>>, %arg8: memref<50x1xf32, #tpu.memory_space<vmem>>, %arg9: memref<1x1xf32, #tpu.memory_space<vmem>>, %arg10: memref<96x1xf32, #tpu.memory_space<vmem>>, %arg11: memref<1x1xf32, #tpu.memory_space<vmem>>, %arg12: memref<1xf32, #tpu.memory_space<smem>>, %arg13: memref<1x8xf32, #tpu.memory_space<vmem>>, %arg14: memref<1x1xf32, #tpu.memory_space<vmem>>, %arg15: memref<1xi32, #tpu.memory_space<smem>>, %arg16: memref<8x32xf32, #tpu.memory_space<vmem>>) attributes {dimension_semantics = [], scalar_prefetch = 0 : i64, scratch_operands = 1 : i64, tpu.core_type = #tpu.core_type<tc>} {
    %c0 = arith.constant 0 : index
    %c0_0 = arith.constant 0 : index
    %0 = vector.load %arg0[%c0, %c0_0] : memref<11x768xf32, #tpu.memory_space<vmem>>, vector<11x768xf32>
    %1 = arith.truncf %0 : vector<11x768xf32> to vector<11x768xbf16>
    %c0_1 = arith.constant 0 : index
    %c0_2 = arith.constant 0 : index
    %2 = vector.load %arg1[%c0_1, %c0_2] : memref<768x384xbf16, #tpu.memory_space<vmem>>, vector<768x384xbf16>
    %cst = arith.constant dense<0.000000e+00> : vector<11x384xf32>
    %3 = tpu.matmul %1, %2, %cst {dimension_numbers = #tpu.dot_dimension_numbers<[1], [0], [0], [1], [0, 0, 1, 1], [], []>} : vector<11x768xbf16>, vector<768x384xbf16>, vector<11x384xf32> -> vector<11x384xf32>
    %c0_3 = arith.constant 0 : index
    %c0_4 = arith.constant 0 : index
    %4 = vector.load %arg2[%c0_3, %c0_4] : memref<1x384xf32, #tpu.memory_space<vmem>>, vector<1x384xf32>
    %5 = vector.broadcast %4 : vector<1x384xf32> to vector<11x384xf32>
    %6 = arith.addf %3, %5 : vector<11x384xf32>
    %c0_5 = arith.constant 0 : index
    %c0_6 = arith.constant 0 : index
    %7 = vector.load %arg3[%c0_5, %c0_6] : memref<1x384xf32, #tpu.memory_space<vmem>>, vector<1x384xf32>
    %8 = vector.extract_strided_slice %6 {offsets = [0, 0], sizes = [1, 32], strides = [1, 1]} : vector<11x384xf32> to vector<1x32xf32>
    %9 = vector.extract_strided_slice %6 {offsets = [0, 32], sizes = [1, 32], strides = [1, 1]} : vector<11x384xf32> to vector<1x32xf32>
    %10 = vector.extract_strided_slice %6 {offsets = [0, 64], sizes = [1, 32], strides = [1, 1]} : vector<11x384xf32> to vector<1x32xf32>
    %11 = vector.extract_strided_slice %7 {offsets = [0, 0], sizes = [1, 32], strides = [1, 1]} : vector<1x384xf32> to vector<1x32xf32>
    %12 = arith.addf %8, %11 : vector<1x32xf32>
    %13 = arith.negf %12 : vector<1x32xf32>
    %14 = math.exp %13 : vector<1x32xf32>
    %cst_7 = arith.constant 1.000000e+00 : f32
    %15 = vector.broadcast %cst_7 : f32 to vector<1x32xf32>
    %16 = arith.addf %15, %14 : vector<1x32xf32>
    %17 = arith.divf %15, %16 : vector<1x32xf32>
    %18 = vector.extract_strided_slice %7 {offsets = [0, 32], sizes = [1, 32], strides = [1, 1]} : vector<1x384xf32> to vector<1x32xf32>
    %19 = arith.addf %9, %18 : vector<1x32xf32>
    %20 = arith.negf %19 : vector<1x32xf32>
    %21 = math.exp %20 : vector<1x32xf32>
    %cst_8 = arith.constant 1.000000e+00 : f32
    %22 = vector.broadcast %cst_8 : f32 to vector<1x32xf32>
    %23 = arith.addf %22, %21 : vector<1x32xf32>
    %24 = arith.divf %22, %23 : vector<1x32xf32>
    %25 = vector.extract_strided_slice %7 {offsets = [0, 64], sizes = [1, 32], strides = [1, 1]} : vector<1x384xf32> to vector<1x32xf32>
    %26 = arith.mulf %17, %25 : vector<1x32xf32>
    %27 = arith.addf %10, %26 : vector<1x32xf32>
    %28 = math.tanh %27 : vector<1x32xf32>
    %cst_9 = arith.constant 1.000000e+00 : f32
    %29 = vector.broadcast %cst_9 : f32 to vector<1x32xf32>
    %30 = arith.subf %29, %24 : vector<1x32xf32>
    %31 = arith.mulf %30, %28 : vector<1x32xf32>
    %32 = vector.extract_strided_slice %6 {offsets = [1, 96], sizes = [1, 32], strides = [1, 1]} : vector<11x384xf32> to vector<1x32xf32>
    %33 = vector.extract_strided_slice %6 {offsets = [1, 128], sizes = [1, 32], strides = [1, 1]} : vector<11x384xf32> to vector<1x32xf32>
    %34 = vector.extract_strided_slice %6 {offsets = [1, 160], sizes = [1, 32], strides = [1, 1]} : vector<11x384xf32> to vector<1x32xf32>
    %35 = vector.extract_strided_slice %7 {offsets = [0, 96], sizes = [1, 32], strides = [1, 1]} : vector<1x384xf32> to vector<1x32xf32>
    %36 = arith.addf %32, %35 : vector<1x32xf32>
    %37 = arith.negf %36 : vector<1x32xf32>
    %38 = math.exp %37 : vector<1x32xf32>
    %cst_10 = arith.constant 1.000000e+00 : f32
    %39 = vector.broadcast %cst_10 : f32 to vector<1x32xf32>
    %40 = arith.addf %39, %38 : vector<1x32xf32>
    %41 = arith.divf %39, %40 : vector<1x32xf32>
    %42 = vector.extract_strided_slice %7 {offsets = [0, 128], sizes = [1, 32], strides = [1, 1]} : vector<1x384xf32> to vector<1x32xf32>
    %43 = arith.addf %33, %42 : vector<1x32xf32>
    %44 = arith.negf %43 : vector<1x32xf32>
    %45 = math.exp %44 : vector<1x32xf32>
    %cst_11 = arith.constant 1.000000e+00 : f32
    %46 = vector.broadcast %cst_11 : f32 to vector<1x32xf32>
    %47 = arith.addf %46, %45 : vector<1x32xf32>
    %48 = arith.divf %46, %47 : vector<1x32xf32>
    %49 = vector.extract_strided_slice %7 {offsets = [0, 160], sizes = [1, 32], strides = [1, 1]} : vector<1x384xf32> to vector<1x32xf32>
    %50 = arith.mulf %41, %49 : vector<1x32xf32>
    %51 = arith.addf %34, %50 : vector<1x32xf32>
    %52 = math.tanh %51 : vector<1x32xf32>
    %cst_12 = arith.constant 1.000000e+00 : f32
    %53 = vector.broadcast %cst_12 : f32 to vector<1x32xf32>
    %54 = arith.subf %53, %48 : vector<1x32xf32>
    %55 = arith.mulf %54, %52 : vector<1x32xf32>
    %56 = vector.extract_strided_slice %6 {offsets = [2, 192], sizes = [1, 32], strides = [1, 1]} : vector<11x384xf32> to vector<1x32xf32>
    %57 = vector.extract_strided_slice %6 {offsets = [2, 224], sizes = [1, 32], strides = [1, 1]} : vector<11x384xf32> to vector<1x32xf32>
    %58 = vector.extract_strided_slice %6 {offsets = [2, 256], sizes = [1, 32], strides = [1, 1]} : vector<11x384xf32> to vector<1x32xf32>
    %59 = vector.extract_strided_slice %7 {offsets = [0, 192], sizes = [1, 32], strides = [1, 1]} : vector<1x384xf32> to vector<1x32xf32>
    %60 = arith.addf %56, %59 : vector<1x32xf32>
    %61 = arith.negf %60 : vector<1x32xf32>
    %62 = math.exp %61 : vector<1x32xf32>
    %cst_13 = arith.constant 1.000000e+00 : f32
    %63 = vector.broadcast %cst_13 : f32 to vector<1x32xf32>
    %64 = arith.addf %63, %62 : vector<1x32xf32>
    %65 = arith.divf %63, %64 : vector<1x32xf32>
    %66 = vector.extract_strided_slice %7 {offsets = [0, 224], sizes = [1, 32], strides = [1, 1]} : vector<1x384xf32> to vector<1x32xf32>
    %67 = arith.addf %57, %66 : vector<1x32xf32>
    %68 = arith.negf %67 : vector<1x32xf32>
    %69 = math.exp %68 : vector<1x32xf32>
    %cst_14 = arith.constant 1.000000e+00 : f32
    %70 = vector.broadcast %cst_14 : f32 to vector<1x32xf32>
    %71 = arith.addf %70, %69 : vector<1x32xf32>
    %72 = arith.divf %70, %71 : vector<1x32xf32>
    %73 = vector.extract_strided_slice %7 {offsets = [0, 256], sizes = [1, 32], strides = [1, 1]} : vector<1x384xf32> to vector<1x32xf32>
    %74 = arith.mulf %65, %73 : vector<1x32xf32>
    %75 = arith.addf %58, %74 : vector<1x32xf32>
    %76 = math.tanh %75 : vector<1x32xf32>
    %cst_15 = arith.constant 1.000000e+00 : f32
    %77 = vector.broadcast %cst_15 : f32 to vector<1x32xf32>
    %78 = arith.subf %77, %72 : vector<1x32xf32>
    %79 = arith.mulf %78, %76 : vector<1x32xf32>
    %c0_16 = arith.constant 0 : index
    %c0_17 = arith.constant 0 : index
    %80 = vector.load %arg4[%c0_16, %c0_17] : memref<32x96xf32, #tpu.memory_space<vmem>>, vector<32x96xf32>
    %81 = vector.extract_strided_slice %7 {offsets = [0, 288], sizes = [1, 96], strides = [1, 1]} : vector<1x384xf32> to vector<1x96xf32>
    %82 = vector.extract_strided_slice %6 {offsets = [3, 288], sizes = [1, 32], strides = [1, 1]} : vector<11x384xf32> to vector<1x32xf32>
    %83 = vector.extract_strided_slice %6 {offsets = [3, 320], sizes = [1, 32], strides = [1, 1]} : vector<11x384xf32> to vector<1x32xf32>
    %84 = vector.extract_strided_slice %6 {offsets = [3, 352], sizes = [1, 32], strides = [1, 1]} : vector<11x384xf32> to vector<1x32xf32>
    %85 = vector.extract_strided_slice %7 {offsets = [0, 288], sizes = [1, 32], strides = [1, 1]} : vector<1x384xf32> to vector<1x32xf32>
    %86 = arith.addf %82, %85 : vector<1x32xf32>
    %87 = arith.negf %86 : vector<1x32xf32>
    %88 = math.exp %87 : vector<1x32xf32>
    %cst_18 = arith.constant 1.000000e+00 : f32
    %89 = vector.broadcast %cst_18 : f32 to vector<1x32xf32>
    %90 = arith.addf %89, %88 : vector<1x32xf32>
    %91 = arith.divf %89, %90 : vector<1x32xf32>
    %92 = vector.extract_strided_slice %7 {offsets = [0, 320], sizes = [1, 32], strides = [1, 1]} : vector<1x384xf32> to vector<1x32xf32>
    %93 = arith.addf %83, %92 : vector<1x32xf32>
    %94 = arith.negf %93 : vector<1x32xf32>
    %95 = math.exp %94 : vector<1x32xf32>
    %cst_19 = arith.constant 1.000000e+00 : f32
    %96 = vector.broadcast %cst_19 : f32 to vector<1x32xf32>
    %97 = arith.addf %96, %95 : vector<1x32xf32>
    %98 = arith.divf %96, %97 : vector<1x32xf32>
    %99 = vector.extract_strided_slice %7 {offsets = [0, 352], sizes = [1, 32], strides = [1, 1]} : vector<1x384xf32> to vector<1x32xf32>
    %100 = arith.mulf %91, %99 : vector<1x32xf32>
    %101 = arith.addf %84, %100 : vector<1x32xf32>
    %102 = math.tanh %101 : vector<1x32xf32>
    %cst_20 = arith.constant 1.000000e+00 : f32
    %103 = vector.broadcast %cst_20 : f32 to vector<1x32xf32>
    %104 = arith.subf %103, %98 : vector<1x32xf32>
    %105 = arith.mulf %104, %102 : vector<1x32xf32>
    %c0_21 = arith.constant 0 : index
    %c0_22 = arith.constant 0 : index
    %106 = vector.load %arg16[%c0_21, %c0_22] : memref<8x32xf32, #tpu.memory_space<vmem>>, vector<1x32xf32>
    tpu.vector_store %arg16[%c0_21, %c0_22], %105 {strides = array<i32>} : memref<8x32xf32, #tpu.memory_space<vmem>>, vector<1x32xf32>,
    %107 = vector.extract_strided_slice %6 {offsets = [4, 288], sizes = [1, 96], strides = [1, 1]} : vector<11x384xf32> to vector<1x96xf32>
    %cst_23 = arith.constant dense<0.000000e+00> : vector<1x96xf32>
    %108 = tpu.matmul %105, %80, %cst_23 {dimension_numbers = #tpu.dot_dimension_numbers<[1], [0], [0], [1], [0, 0, 1, 1], [], []>} : vector<1x32xf32>, vector<32x96xf32>, vector<1x96xf32> -> vector<1x96xf32>
    %109 = arith.addf %108, %81 : vector<1x96xf32>
    %110 = vector.extract_strided_slice %107 {offsets = [0, 0], sizes = [1, 32], strides = [1, 1]} : vector<1x96xf32> to vector<1x32xf32>
    %111 = vector.extract_strided_slice %109 {offsets = [0, 0], sizes = [1, 32], strides = [1, 1]} : vector<1x96xf32> to vector<1x32xf32>
    %112 = arith.addf %110, %111 : vector<1x32xf32>
    %113 = arith.negf %112 : vector<1x32xf32>
    %114 = math.exp %113 : vector<1x32xf32>
    %cst_24 = arith.constant 1.000000e+00 : f32
    %115 = vector.broadcast %cst_24 : f32 to vector<1x32xf32>
    %116 = arith.addf %115, %114 : vector<1x32xf32>
    %117 = arith.divf %115, %116 : vector<1x32xf32>
    %118 = vector.extract_strided_slice %107 {offsets = [0, 32], sizes = [1, 32], strides = [1, 1]} : vector<1x96xf32> to vector<1x32xf32>
    %119 = vector.extract_strided_slice %109 {offsets = [0, 32], sizes = [1, 32], strides = [1, 1]} : vector<1x96xf32> to vector<1x32xf32>
    %120 = arith.addf %118, %119 : vector<1x32xf32>
    %121 = arith.negf %120 : vector<1x32xf32>
    %122 = math.exp %121 : vector<1x32xf32>
    %cst_25 = arith.constant 1.000000e+00 : f32
    %123 = vector.broadcast %cst_25 : f32 to vector<1x32xf32>
    %124 = arith.addf %123, %122 : vector<1x32xf32>
    %125 = arith.divf %123, %124 : vector<1x32xf32>
    %126 = vector.extract_strided_slice %107 {offsets = [0, 64], sizes = [1, 32], strides = [1, 1]} : vector<1x96xf32> to vector<1x32xf32>
    %127 = vector.extract_strided_slice %109 {offsets = [0, 64], sizes = [1, 32], strides = [1, 1]} : vector<1x96xf32> to vector<1x32xf32>
    %128 = arith.mulf %117, %127 : vector<1x32xf32>
    %129 = arith.addf %126, %128 : vector<1x32xf32>
    %130 = math.tanh %129 : vector<1x32xf32>
    %cst_26 = arith.constant 1.000000e+00 : f32
    %131 = vector.broadcast %cst_26 : f32 to vector<1x32xf32>
    %132 = arith.subf %131, %125 : vector<1x32xf32>
    %133 = arith.mulf %132, %130 : vector<1x32xf32>
    %134 = arith.mulf %125, %105 : vector<1x32xf32>
    %135 = arith.addf %133, %134 : vector<1x32xf32>
    %c1 = arith.constant 1 : index
    %c0_27 = arith.constant 0 : index
    %136 = vector.load %arg16[%c1, %c0_27] : memref<8x32xf32, #tpu.memory_space<vmem>>, vector<1x32xf32>
    tpu.vector_store %arg16[%c1, %c0_27], %135 {strides = array<i32>} : memref<8x32xf32, #tpu.memory_space<vmem>>, vector<1x32xf32>,
    %137 = vector.extract_strided_slice %6 {offsets = [5, 288], sizes = [1, 96], strides = [1, 1]} : vector<11x384xf32> to vector<1x96xf32>
    %cst_28 = arith.constant dense<0.000000e+00> : vector<1x96xf32>
    %138 = tpu.matmul %135, %80, %cst_28 {dimension_numbers = #tpu.dot_dimension_numbers<[1], [0], [0], [1], [0, 0, 1, 1], [], []>} : vector<1x32xf32>, vector<32x96xf32>, vector<1x96xf32> -> vector<1x96xf32>
    %139 = arith.addf %138, %81 : vector<1x96xf32>
    %140 = vector.extract_strided_slice %137 {offsets = [0, 0], sizes = [1, 32], strides = [1, 1]} : vector<1x96xf32> to vector<1x32xf32>
    %141 = vector.extract_strided_slice %139 {offsets = [0, 0], sizes = [1, 32], strides = [1, 1]} : vector<1x96xf32> to vector<1x32xf32>
    %142 = arith.addf %140, %141 : vector<1x32xf32>
    %143 = arith.negf %142 : vector<1x32xf32>
    %144 = math.exp %143 : vector<1x32xf32>
    %cst_29 = arith.constant 1.000000e+00 : f32
    %145 = vector.broadcast %cst_29 : f32 to vector<1x32xf32>
    %146 = arith.addf %145, %144 : vector<1x32xf32>
    %147 = arith.divf %145, %146 : vector<1x32xf32>
    %148 = vector.extract_strided_slice %137 {offsets = [0, 32], sizes = [1, 32], strides = [1, 1]} : vector<1x96xf32> to vector<1x32xf32>
    %149 = vector.extract_strided_slice %139 {offsets = [0, 32], sizes = [1, 32], strides = [1, 1]} : vector<1x96xf32> to vector<1x32xf32>
    %150 = arith.addf %148, %149 : vector<1x32xf32>
    %151 = arith.negf %150 : vector<1x32xf32>
    %152 = math.exp %151 : vector<1x32xf32>
    %cst_30 = arith.constant 1.000000e+00 : f32
    %153 = vector.broadcast %cst_30 : f32 to vector<1x32xf32>
    %154 = arith.addf %153, %152 : vector<1x32xf32>
    %155 = arith.divf %153, %154 : vector<1x32xf32>
    %156 = vector.extract_strided_slice %137 {offsets = [0, 64], sizes = [1, 32], strides = [1, 1]} : vector<1x96xf32> to vector<1x32xf32>
    %157 = vector.extract_strided_slice %139 {offsets = [0, 64], sizes = [1, 32], strides = [1, 1]} : vector<1x96xf32> to vector<1x32xf32>
    %158 = arith.mulf %147, %157 : vector<1x32xf32>
    %159 = arith.addf %156, %158 : vector<1x32xf32>
    %160 = math.tanh %159 : vector<1x32xf32>
    %cst_31 = arith.constant 1.000000e+00 : f32
    %161 = vector.broadcast %cst_31 : f32 to vector<1x32xf32>
    %162 = arith.subf %161, %155 : vector<1x32xf32>
    %163 = arith.mulf %162, %160 : vector<1x32xf32>
    %164 = arith.mulf %155, %135 : vector<1x32xf32>
    %165 = arith.addf %163, %164 : vector<1x32xf32>
    %c2 = arith.constant 2 : index
    %c0_32 = arith.constant 0 : index
    %166 = vector.load %arg16[%c2, %c0_32] : memref<8x32xf32, #tpu.memory_space<vmem>>, vector<1x32xf32>
    tpu.vector_store %arg16[%c2, %c0_32], %165 {strides = array<i32>} : memref<8x32xf32, #tpu.memory_space<vmem>>, vector<1x32xf32>,
    %167 = vector.extract_strided_slice %6 {offsets = [6, 288], sizes = [1, 96], strides = [1, 1]} : vector<11x384xf32> to vector<1x96xf32>
    %cst_33 = arith.constant dense<0.000000e+00> : vector<1x96xf32>
    %168 = tpu.matmul %165, %80, %cst_33 {dimension_numbers = #tpu.dot_dimension_numbers<[1], [0], [0], [1], [0, 0, 1, 1], [], []>} : vector<1x32xf32>, vector<32x96xf32>, vector<1x96xf32> -> vector<1x96xf32>
    %169 = arith.addf %168, %81 : vector<1x96xf32>
    %170 = vector.extract_strided_slice %167 {offsets = [0, 0], sizes = [1, 32], strides = [1, 1]} : vector<1x96xf32> to vector<1x32xf32>
    %171 = vector.extract_strided_slice %169 {offsets = [0, 0], sizes = [1, 32], strides = [1, 1]} : vector<1x96xf32> to vector<1x32xf32>
    %172 = arith.addf %170, %171 : vector<1x32xf32>
    %173 = arith.negf %172 : vector<1x32xf32>
    %174 = math.exp %173 : vector<1x32xf32>
    %cst_34 = arith.constant 1.000000e+00 : f32
    %175 = vector.broadcast %cst_34 : f32 to vector<1x32xf32>
    %176 = arith.addf %175, %174 : vector<1x32xf32>
    %177 = arith.divf %175, %176 : vector<1x32xf32>
    %178 = vector.extract_strided_slice %167 {offsets = [0, 32], sizes = [1, 32], strides = [1, 1]} : vector<1x96xf32> to vector<1x32xf32>
    %179 = vector.extract_strided_slice %169 {offsets = [0, 32], sizes = [1, 32], strides = [1, 1]} : vector<1x96xf32> to vector<1x32xf32>
    %180 = arith.addf %178, %179 : vector<1x32xf32>
    %181 = arith.negf %180 : vector<1x32xf32>
    %182 = math.exp %181 : vector<1x32xf32>
    %cst_35 = arith.constant 1.000000e+00 : f32
    %183 = vector.broadcast %cst_35 : f32 to vector<1x32xf32>
    %184 = arith.addf %183, %182 : vector<1x32xf32>
    %185 = arith.divf %183, %184 : vector<1x32xf32>
    %186 = vector.extract_strided_slice %167 {offsets = [0, 64], sizes = [1, 32], strides = [1, 1]} : vector<1x96xf32> to vector<1x32xf32>
    %187 = vector.extract_strided_slice %169 {offsets = [0, 64], sizes = [1, 32], strides = [1, 1]} : vector<1x96xf32> to vector<1x32xf32>
    %188 = arith.mulf %177, %187 : vector<1x32xf32>
    %189 = arith.addf %186, %188 : vector<1x32xf32>
    %190 = math.tanh %189 : vector<1x32xf32>
    %cst_36 = arith.constant 1.000000e+00 : f32
    %191 = vector.broadcast %cst_36 : f32 to vector<1x32xf32>
    %192 = arith.subf %191, %185 : vector<1x32xf32>
    %193 = arith.mulf %192, %190 : vector<1x32xf32>
    %194 = arith.mulf %185, %165 : vector<1x32xf32>
    %195 = arith.addf %193, %194 : vector<1x32xf32>
    %c3 = arith.constant 3 : index
    %c0_37 = arith.constant 0 : index
    %196 = vector.load %arg16[%c3, %c0_37] : memref<8x32xf32, #tpu.memory_space<vmem>>, vector<1x32xf32>
    tpu.vector_store %arg16[%c3, %c0_37], %195 {strides = array<i32>} : memref<8x32xf32, #tpu.memory_space<vmem>>, vector<1x32xf32>,
    %197 = vector.extract_strided_slice %6 {offsets = [7, 288], sizes = [1, 96], strides = [1, 1]} : vector<11x384xf32> to vector<1x96xf32>
    %cst_38 = arith.constant dense<0.000000e+00> : vector<1x96xf32>
    %198 = tpu.matmul %195, %80, %cst_38 {dimension_numbers = #tpu.dot_dimension_numbers<[1], [0], [0], [1], [0, 0, 1, 1], [], []>} : vector<1x32xf32>, vector<32x96xf32>, vector<1x96xf32> -> vector<1x96xf32>
    %199 = arith.addf %198, %81 : vector<1x96xf32>
    %200 = vector.extract_strided_slice %197 {offsets = [0, 0], sizes = [1, 32], strides = [1, 1]} : vector<1x96xf32> to vector<1x32xf32>
    %201 = vector.extract_strided_slice %199 {offsets = [0, 0], sizes = [1, 32], strides = [1, 1]} : vector<1x96xf32> to vector<1x32xf32>
    %202 = arith.addf %200, %201 : vector<1x32xf32>
    %203 = arith.negf %202 : vector<1x32xf32>
    %204 = math.exp %203 : vector<1x32xf32>
    %cst_39 = arith.constant 1.000000e+00 : f32
    %205 = vector.broadcast %cst_39 : f32 to vector<1x32xf32>
    %206 = arith.addf %205, %204 : vector<1x32xf32>
    %207 = arith.divf %205, %206 : vector<1x32xf32>
    %208 = vector.extract_strided_slice %197 {offsets = [0, 32], sizes = [1, 32], strides = [1, 1]} : vector<1x96xf32> to vector<1x32xf32>
    %209 = vector.extract_strided_slice %199 {offsets = [0, 32], sizes = [1, 32], strides = [1, 1]} : vector<1x96xf32> to vector<1x32xf32>
    %210 = arith.addf %208, %209 : vector<1x32xf32>
    %211 = arith.negf %210 : vector<1x32xf32>
    %212 = math.exp %211 : vector<1x32xf32>
    %cst_40 = arith.constant 1.000000e+00 : f32
    %213 = vector.broadcast %cst_40 : f32 to vector<1x32xf32>
    %214 = arith.addf %213, %212 : vector<1x32xf32>
    %215 = arith.divf %213, %214 : vector<1x32xf32>
    %216 = vector.extract_strided_slice %197 {offsets = [0, 64], sizes = [1, 32], strides = [1, 1]} : vector<1x96xf32> to vector<1x32xf32>
    %217 = vector.extract_strided_slice %199 {offsets = [0, 64], sizes = [1, 32], strides = [1, 1]} : vector<1x96xf32> to vector<1x32xf32>
    %218 = arith.mulf %207, %217 : vector<1x32xf32>
    %219 = arith.addf %216, %218 : vector<1x32xf32>
    %220 = math.tanh %219 : vector<1x32xf32>
    %cst_41 = arith.constant 1.000000e+00 : f32
    %221 = vector.broadcast %cst_41 : f32 to vector<1x32xf32>
    %222 = arith.subf %221, %215 : vector<1x32xf32>
    %223 = arith.mulf %222, %220 : vector<1x32xf32>
    %224 = arith.mulf %215, %195 : vector<1x32xf32>
    %225 = arith.addf %223, %224 : vector<1x32xf32>
    %c4 = arith.constant 4 : index
    %c0_42 = arith.constant 0 : index
    %226 = vector.load %arg16[%c4, %c0_42] : memref<8x32xf32, #tpu.memory_space<vmem>>, vector<1x32xf32>
    tpu.vector_store %arg16[%c4, %c0_42], %225 {strides = array<i32>} : memref<8x32xf32, #tpu.memory_space<vmem>>, vector<1x32xf32>,
    %227 = vector.extract_strided_slice %6 {offsets = [8, 288], sizes = [1, 96], strides = [1, 1]} : vector<11x384xf32> to vector<1x96xf32>
    %cst_43 = arith.constant dense<0.000000e+00> : vector<1x96xf32>
    %228 = tpu.matmul %225, %80, %cst_43 {dimension_numbers = #tpu.dot_dimension_numbers<[1], [0], [0], [1], [0, 0, 1, 1], [], []>} : vector<1x32xf32>, vector<32x96xf32>, vector<1x96xf32> -> vector<1x96xf32>
    %229 = arith.addf %228, %81 : vector<1x96xf32>
    %230 = vector.extract_strided_slice %227 {offsets = [0, 0], sizes = [1, 32], strides = [1, 1]} : vector<1x96xf32> to vector<1x32xf32>
    %231 = vector.extract_strided_slice %229 {offsets = [0, 0], sizes = [1, 32], strides = [1, 1]} : vector<1x96xf32> to vector<1x32xf32>
    %232 = arith.addf %230, %231 : vector<1x32xf32>
    %233 = arith.negf %232 : vector<1x32xf32>
    %234 = math.exp %233 : vector<1x32xf32>
    %cst_44 = arith.constant 1.000000e+00 : f32
    %235 = vector.broadcast %cst_44 : f32 to vector<1x32xf32>
    %236 = arith.addf %235, %234 : vector<1x32xf32>
    %237 = arith.divf %235, %236 : vector<1x32xf32>
    %238 = vector.extract_strided_slice %227 {offsets = [0, 32], sizes = [1, 32], strides = [1, 1]} : vector<1x96xf32> to vector<1x32xf32>
    %239 = vector.extract_strided_slice %229 {offsets = [0, 32], sizes = [1, 32], strides = [1, 1]} : vector<1x96xf32> to vector<1x32xf32>
    %240 = arith.addf %238, %239 : vector<1x32xf32>
    %241 = arith.negf %240 : vector<1x32xf32>
    %242 = math.exp %241 : vector<1x32xf32>
    %cst_45 = arith.constant 1.000000e+00 : f32
    %243 = vector.broadcast %cst_45 : f32 to vector<1x32xf32>
    %244 = arith.addf %243, %242 : vector<1x32xf32>
    %245 = arith.divf %243, %244 : vector<1x32xf32>
    %246 = vector.extract_strided_slice %227 {offsets = [0, 64], sizes = [1, 32], strides = [1, 1]} : vector<1x96xf32> to vector<1x32xf32>
    %247 = vector.extract_strided_slice %229 {offsets = [0, 64], sizes = [1, 32], strides = [1, 1]} : vector<1x96xf32> to vector<1x32xf32>
    %248 = arith.mulf %237, %247 : vector<1x32xf32>
    %249 = arith.addf %246, %248 : vector<1x32xf32>
    %250 = math.tanh %249 : vector<1x32xf32>
    %cst_46 = arith.constant 1.000000e+00 : f32
    %251 = vector.broadcast %cst_46 : f32 to vector<1x32xf32>
    %252 = arith.subf %251, %245 : vector<1x32xf32>
    %253 = arith.mulf %252, %250 : vector<1x32xf32>
    %254 = arith.mulf %245, %225 : vector<1x32xf32>
    %255 = arith.addf %253, %254 : vector<1x32xf32>
    %c5 = arith.constant 5 : index
    %c0_47 = arith.constant 0 : index
    %256 = vector.load %arg16[%c5, %c0_47] : memref<8x32xf32, #tpu.memory_space<vmem>>, vector<1x32xf32>
    tpu.vector_store %arg16[%c5, %c0_47], %255 {strides = array<i32>} : memref<8x32xf32, #tpu.memory_space<vmem>>, vector<1x32xf32>,
    %257 = vector.extract_strided_slice %6 {offsets = [9, 288], sizes = [1, 96], strides = [1, 1]} : vector<11x384xf32> to vector<1x96xf32>
    %cst_48 = arith.constant dense<0.000000e+00> : vector<1x96xf32>
    %258 = tpu.matmul %255, %80, %cst_48 {dimension_numbers = #tpu.dot_dimension_numbers<[1], [0], [0], [1], [0, 0, 1, 1], [], []>} : vector<1x32xf32>, vector<32x96xf32>, vector<1x96xf32> -> vector<1x96xf32>
    %259 = arith.addf %258, %81 : vector<1x96xf32>
    %260 = vector.extract_strided_slice %257 {offsets = [0, 0], sizes = [1, 32], strides = [1, 1]} : vector<1x96xf32> to vector<1x32xf32>
    %261 = vector.extract_strided_slice %259 {offsets = [0, 0], sizes = [1, 32], strides = [1, 1]} : vector<1x96xf32> to vector<1x32xf32>
    %262 = arith.addf %260, %261 : vector<1x32xf32>
    %263 = arith.negf %262 : vector<1x32xf32>
    %264 = math.exp %263 : vector<1x32xf32>
    %cst_49 = arith.constant 1.000000e+00 : f32
    %265 = vector.broadcast %cst_49 : f32 to vector<1x32xf32>
    %266 = arith.addf %265, %264 : vector<1x32xf32>
    %267 = arith.divf %265, %266 : vector<1x32xf32>
    %268 = vector.extract_strided_slice %257 {offsets = [0, 32], sizes = [1, 32], strides = [1, 1]} : vector<1x96xf32> to vector<1x32xf32>
    %269 = vector.extract_strided_slice %259 {offsets = [0, 32], sizes = [1, 32], strides = [1, 1]} : vector<1x96xf32> to vector<1x32xf32>
    %270 = arith.addf %268, %269 : vector<1x32xf32>
    %271 = arith.negf %270 : vector<1x32xf32>
    %272 = math.exp %271 : vector<1x32xf32>
    %cst_50 = arith.constant 1.000000e+00 : f32
    %273 = vector.broadcast %cst_50 : f32 to vector<1x32xf32>
    %274 = arith.addf %273, %272 : vector<1x32xf32>
    %275 = arith.divf %273, %274 : vector<1x32xf32>
    %276 = vector.extract_strided_slice %257 {offsets = [0, 64], sizes = [1, 32], strides = [1, 1]} : vector<1x96xf32> to vector<1x32xf32>
    %277 = vector.extract_strided_slice %259 {offsets = [0, 64], sizes = [1, 32], strides = [1, 1]} : vector<1x96xf32> to vector<1x32xf32>
    %278 = arith.mulf %267, %277 : vector<1x32xf32>
    %279 = arith.addf %276, %278 : vector<1x32xf32>
    %280 = math.tanh %279 : vector<1x32xf32>
    %cst_51 = arith.constant 1.000000e+00 : f32
    %281 = vector.broadcast %cst_51 : f32 to vector<1x32xf32>
    %282 = arith.subf %281, %275 : vector<1x32xf32>
    %283 = arith.mulf %282, %280 : vector<1x32xf32>
    %284 = arith.mulf %275, %255 : vector<1x32xf32>
    %285 = arith.addf %283, %284 : vector<1x32xf32>
    %c6 = arith.constant 6 : index
    %c0_52 = arith.constant 0 : index
    %286 = vector.load %arg16[%c6, %c0_52] : memref<8x32xf32, #tpu.memory_space<vmem>>, vector<1x32xf32>
    tpu.vector_store %arg16[%c6, %c0_52], %285 {strides = array<i32>} : memref<8x32xf32, #tpu.memory_space<vmem>>, vector<1x32xf32>,
    %287 = vector.extract_strided_slice %6 {offsets = [10, 288], sizes = [1, 96], strides = [1, 1]} : vector<11x384xf32> to vector<1x96xf32>
    %cst_53 = arith.constant dense<0.000000e+00> : vector<1x96xf32>
    %288 = tpu.matmul %285, %80, %cst_53 {dimension_numbers = #tpu.dot_dimension_numbers<[1], [0], [0], [1], [0, 0, 1, 1], [], []>} : vector<1x32xf32>, vector<32x96xf32>, vector<1x96xf32> -> vector<1x96xf32>
    %289 = arith.addf %288, %81 : vector<1x96xf32>
    %290 = vector.extract_strided_slice %287 {offsets = [0, 0], sizes = [1, 32], strides = [1, 1]} : vector<1x96xf32> to vector<1x32xf32>
    %291 = vector.extract_strided_slice %289 {offsets = [0, 0], sizes = [1, 32], strides = [1, 1]} : vector<1x96xf32> to vector<1x32xf32>
    %292 = arith.addf %290, %291 : vector<1x32xf32>
    %293 = arith.negf %292 : vector<1x32xf32>
    %294 = math.exp %293 : vector<1x32xf32>
    %cst_54 = arith.constant 1.000000e+00 : f32
    %295 = vector.broadcast %cst_54 : f32 to vector<1x32xf32>
    %296 = arith.addf %295, %294 : vector<1x32xf32>
    %297 = arith.divf %295, %296 : vector<1x32xf32>
    %298 = vector.extract_strided_slice %287 {offsets = [0, 32], sizes = [1, 32], strides = [1, 1]} : vector<1x96xf32> to vector<1x32xf32>
    %299 = vector.extract_strided_slice %289 {offsets = [0, 32], sizes = [1, 32], strides = [1, 1]} : vector<1x96xf32> to vector<1x32xf32>
    %300 = arith.addf %298, %299 : vector<1x32xf32>
    %301 = arith.negf %300 : vector<1x32xf32>
    %302 = math.exp %301 : vector<1x32xf32>
    %cst_55 = arith.constant 1.000000e+00 : f32
    %303 = vector.broadcast %cst_55 : f32 to vector<1x32xf32>
    %304 = arith.addf %303, %302 : vector<1x32xf32>
    %305 = arith.divf %303, %304 : vector<1x32xf32>
    %306 = vector.extract_strided_slice %287 {offsets = [0, 64], sizes = [1, 32], strides = [1, 1]} : vector<1x96xf32> to vector<1x32xf32>
    %307 = vector.extract_strided_slice %289 {offsets = [0, 64], sizes = [1, 32], strides = [1, 1]} : vector<1x96xf32> to vector<1x32xf32>
    %308 = arith.mulf %297, %307 : vector<1x32xf32>
    %309 = arith.addf %306, %308 : vector<1x32xf32>
    %310 = math.tanh %309 : vector<1x32xf32>
    %cst_56 = arith.constant 1.000000e+00 : f32
    %311 = vector.broadcast %cst_56 : f32 to vector<1x32xf32>
    %312 = arith.subf %311, %305 : vector<1x32xf32>
    %313 = arith.mulf %312, %310 : vector<1x32xf32>
    %314 = arith.mulf %305, %285 : vector<1x32xf32>
    %315 = arith.addf %313, %314 : vector<1x32xf32>
    %c7 = arith.constant 7 : index
    %c0_57 = arith.constant 0 : index
    %316 = vector.load %arg16[%c7, %c0_57] : memref<8x32xf32, #tpu.memory_space<vmem>>, vector<1x32xf32>
    tpu.vector_store %arg16[%c7, %c0_57], %315 {strides = array<i32>} : memref<8x32xf32, #tpu.memory_space<vmem>>, vector<1x32xf32>,
    %c0_58 = arith.constant 0 : index
    %c0_59 = arith.constant 0 : index
    %317 = vector.load %arg16[%c0_58, %c0_59] : memref<8x32xf32, #tpu.memory_space<vmem>>, vector<8x32xf32>
    %318 = tpu.concatenate %31, %55, %79 in 1 : vector<1x32xf32>, vector<1x32xf32>, vector<1x32xf32> -> vector<1x96xf32>
    %c0_60 = arith.constant 0 : index
    %c0_61 = arith.constant 0 : index
    %319 = vector.load %arg10[%c0_60, %c0_61] : memref<96x1xf32, #tpu.memory_space<vmem>>, vector<96x1xf32>
    %cst_62 = arith.constant dense<0.000000e+00> : vector<1x1xf32>
    %320 = tpu.matmul %318, %319, %cst_62 {dimension_numbers = #tpu.dot_dimension_numbers<[1], [0], [0], [1], [0, 0, 1, 1], [], []>} : vector<1x96xf32>, vector<96x1xf32>, vector<1x1xf32> -> vector<1x1xf32>
    %c0_63 = arith.constant 0 : index
    %c0_64 = arith.constant 0 : index
    %321 = vector.load %arg11[%c0_63, %c0_64] : memref<1x1xf32, #tpu.memory_space<vmem>>, vector<1x1xf32>
    %322 = arith.addf %320, %321 : vector<1x1xf32>
    %c0_65 = arith.constant 0 : index
    %c0_66 = arith.constant 0 : index
    %323 = vector.load %arg14[%c0_65, %c0_66] : memref<1x1xf32, #tpu.memory_space<vmem>>, vector<1x1xf32>
    tpu.vector_store %arg14[%c0_65, %c0_66], %322 {strides = array<i32>} : memref<1x1xf32, #tpu.memory_space<vmem>>, vector<1x1xf32>,
    %c0_67 = arith.constant 0 : index
    %c0_68 = arith.constant 0 : index
    %324 = vector.load %arg5[%c0_67, %c0_68] : memref<96x50xf32, #tpu.memory_space<vmem>>, vector<96x50xf32>
    %cst_69 = arith.constant dense<0.000000e+00> : vector<1x50xf32>
    %325 = tpu.matmul %318, %324, %cst_69 {dimension_numbers = #tpu.dot_dimension_numbers<[1], [0], [0], [1], [0, 0, 1, 1], [], []>} : vector<1x96xf32>, vector<96x50xf32>, vector<1x50xf32> -> vector<1x50xf32>
    %c0_70 = arith.constant 0 : index
    %c0_71 = arith.constant 0 : index
    %326 = vector.load %arg6[%c0_70, %c0_71] : memref<32x50xf32, #tpu.memory_space<vmem>>, vector<32x50xf32>
    %cst_72 = arith.constant dense<0.000000e+00> : vector<8x50xf32>
    %327 = tpu.matmul %317, %326, %cst_72 {dimension_numbers = #tpu.dot_dimension_numbers<[1], [0], [0], [1], [0, 0, 1, 1], [], []>} : vector<8x32xf32>, vector<32x50xf32>, vector<8x50xf32> -> vector<8x50xf32>
    %328 = vector.broadcast %325 : vector<1x50xf32> to vector<8x50xf32>
    %329 = arith.addf %328, %327 : vector<8x50xf32>
    %c0_73 = arith.constant 0 : index
    %c0_74 = arith.constant 0 : index
    %330 = vector.load %arg7[%c0_73, %c0_74] : memref<1x50xf32, #tpu.memory_space<vmem>>, vector<1x50xf32>
    %331 = vector.broadcast %330 : vector<1x50xf32> to vector<8x50xf32>
    %332 = arith.addf %329, %331 : vector<8x50xf32>
    %cst_75 = arith.constant 0.000000e+00 : f32
    %333 = vector.broadcast %cst_75 : f32 to vector<8x50xf32>
    %334 = arith.maximumf %332, %333 : vector<8x50xf32>
    %c0_76 = arith.constant 0 : index
    %c0_77 = arith.constant 0 : index
    %335 = vector.load %arg8[%c0_76, %c0_77] : memref<50x1xf32, #tpu.memory_space<vmem>>, vector<50x1xf32>
    %cst_78 = arith.constant dense<0.000000e+00> : vector<8x1xf32>
    %336 = tpu.matmul %334, %335, %cst_78 {dimension_numbers = #tpu.dot_dimension_numbers<[1], [0], [0], [1], [0, 0, 1, 1], [], []>} : vector<8x50xf32>, vector<50x1xf32>, vector<8x1xf32> -> vector<8x1xf32>
    %c0_79 = arith.constant 0 : index
    %c0_80 = arith.constant 0 : index
    %337 = vector.load %arg9[%c0_79, %c0_80] : memref<1x1xf32, #tpu.memory_space<vmem>>, vector<1x1xf32>
    %338 = vector.broadcast %337 : vector<1x1xf32> to vector<8x1xf32>
    %339 = arith.addf %336, %338 : vector<8x1xf32>
    %340 = tpu.iota {dimensions = array<i32: 0>} : vector<8x8xi32>
    %341 = tpu.iota {dimensions = array<i32: 1>} : vector<8x8xi32>
    %342 = arith.cmpi eq, %340, %341 : vector<8x8xi32>
    %343 = arith.extui %342 : vector<8x8xi1> to vector<8x8xi32>
    %344 = arith.sitofp %343 : vector<8x8xi32> to vector<8x8xf32>
    %345 = vector.broadcast %339 : vector<8x1xf32> to vector<8x8xf32>
    %346 = arith.mulf %345, %344 : vector<8x8xf32>
    %cst_81 = arith.constant dense<0.000000e+00> : vector<8xf32>
    %347 = vector.multi_reduction <add>, %346, %cst_81 [0] : vector<8x8xf32> to vector<8xf32>
    %348 = vector.shape_cast %347 : vector<8xf32> to vector<1x8xf32>
    %c0_82 = arith.constant 0 : index
    %c0_83 = arith.constant 0 : index
    %349 = vector.load %arg13[%c0_82, %c0_83] : memref<1x8xf32, #tpu.memory_space<vmem>>, vector<1x8xf32>
    tpu.vector_store %arg13[%c0_82, %c0_83], %348 {strides = array<i32>} : memref<1x8xf32, #tpu.memory_space<vmem>>, vector<1x8xf32>,
    %cst_84 = arith.constant dense<0xFF800000> : vector<1xf32>
    %350 = vector.multi_reduction <maximumf>, %348, %cst_84 [1] : vector<1x8xf32> to vector<1xf32>
    %351 = vector.shape_cast %350 : vector<1xf32> to vector<1x1xf32>
    %352 = vector.broadcast %351 : vector<1x1xf32> to vector<1x8xf32>
    %353 = arith.subf %348, %352 : vector<1x8xf32>
    %354 = math.exp %353 : vector<1x8xf32>
    %cst_85 = arith.constant dense<0.000000e+00> : vector<1xf32>
    %355 = vector.multi_reduction <add>, %354, %cst_85 [1] : vector<1x8xf32> to vector<1xf32>
    %356 = vector.shape_cast %355 : vector<1xf32> to vector<1x1xf32>
    %357 = tpu.reciprocal %356 {approx = true} : vector<1x1xf32> -> vector<1x1xf32>
    %358 = vector.broadcast %357 : vector<1x1xf32> to vector<1x8xf32>
    %359 = arith.mulf %354, %358 : vector<1x8xf32>
    %360 = arith.cmpi sle, %340, %341 : vector<8x8xi32>
    %361 = arith.extui %360 : vector<8x8xi1> to vector<8x8xi32>
    %362 = arith.sitofp %361 : vector<8x8xi32> to vector<8x8xf32>
    %cst_86 = arith.constant dense<0.000000e+00> : vector<1x8xf32>
    %363 = tpu.matmul %359, %362, %cst_86 {dimension_numbers = #tpu.dot_dimension_numbers<[1], [0], [0], [1], [0, 0, 1, 1], [], []>} : vector<1x8xf32>, vector<8x8xf32>, vector<1x8xf32> -> vector<1x8xf32>
    %c0_87 = arith.constant 0 : index
    %364 = memref.load %arg12[%c0_87] : memref<1xf32, #tpu.memory_space<smem>>
    %365 = vector.broadcast %364 : f32 to vector<1x8xf32>
    %366 = arith.cmpf ole, %363, %365 : vector<1x8xf32>
    %367 = arith.extui %366 : vector<1x8xi1> to vector<1x8xi32>
    %368 = vector.shape_cast %367 : vector<1x8xi32> to vector<1x1x8xi32>
    %cst_88 = arith.constant dense<0> : vector<1xi32>
    %369 = vector.multi_reduction <add>, %368, %cst_88 [1, 2] : vector<1x1x8xi32> to vector<1xi32>
    %370 = vector.shape_cast %369 : vector<1xi32> to vector<1x1x1xi32>
    %371 = vector.extract %370[0, 0, 0] : i32 from vector<1x1x1xi32>
    %c7_i32 = arith.constant 7 : i32
    %372 = arith.minsi %371, %c7_i32 : i32
    %c0_89 = arith.constant 0 : index
    %373 = memref.load %arg15[%c0_89] : memref<1xi32, #tpu.memory_space<smem>>
    memref.store %372, %arg15[%c0_89] : memref<1xi32, #tpu.memory_space<smem>>
    return
  }
}

</mosaic_0001>

<llo_original>
// kernel: tpu_custom_call.1
$region0: #{tpu_custom_call.1}
  #allocation0 [shape = 'u32[]', space=smem, size = 0x4, offset = 0x4, fixed_abs, tag = 'smem constant byte address 0x4 - core index']
  #allocation1 [shape = 'u32[72,128]{1,0:T(1,128)}', space=vmem, size = 0x9000, scoped, tag = 'internal scratch']
  #allocation2 [shape = 'f32[8,32]{1,0:T(8,128)}', space=vmem, size = 0x1000, scoped, tag = 'scratch operand']
  #allocation3 [shape = 'f32[1,1]{1,0:T(1,128)S(1)}', space=vmem, size = 0x200, scoped, tag = 'scoped memory for tpu_custom_call.1']
  #allocation4 [shape = 'f32[1,1]{1,0:T(1,128)S(1)}', space=vmem, size = 0x200, scoped, tag = 'scoped memory for tpu_custom_call.1']
  #allocation5 [shape = 'f32[1]{0:T(128)S(6)}', space=smem, size = 0x200, scoped, tag = 'scoped memory for tpu_custom_call.1']
  %s0 = inlined_call_operand.vmem [shape: f32[11,768], index: 0, kind: input, shape index: {}]
  %s1 = inlined_call_operand.hbm [shape: bf16[768,384], index: 1, kind: input, shape index: {}]
  %s2 = inlined_call_operand.vmem [shape: f32[1,384], index: 2, kind: input, shape index: {}]
  %s3 = inlined_call_operand.vmem [shape: f32[1,384], index: 3, kind: input, shape index: {}]
  %s4 = inlined_call_operand.vmem [shape: f32[32,96], index: 4, kind: input, shape index: {}]
  %s5 = inlined_call_operand.vmem [shape: f32[96,50], index: 5, kind: input, shape index: {}]
  %s6 = inlined_call_operand.vmem [shape: f32[32,50], index: 6, kind: input, shape index: {}]
  %s7 = inlined_call_operand.vmem [shape: f32[1,50], index: 7, kind: input, shape index: {}]
  %s8 = inlined_call_operand.vmem [shape: f32[50,1], index: 8, kind: input, shape index: {}]
  %s9 = inlined_call_operand.<no memory space> [shape: f32[1,1], index: 9, kind: input, shape index: {}]
  %s10 = inlined_call_operand.vmem [shape: f32[96,1], index: 10, kind: input, shape index: {}]
  %s11 = inlined_call_operand.<no memory space> [shape: f32[1,1], index: 11, kind: input, shape index: {}]
  %s12 = inlined_call_operand.<no memory space> [shape: f32[1], index: 12, kind: input, shape index: {}]
  %s13 = inlined_call_operand.hbm [shape: f32[1,8], index: 13, kind: output, shape index: {0}]
  %s14 = inlined_call_operand.hbm [shape: f32[1,1], index: 14, kind: output, shape index: {1}]
  %s15 = inlined_call_operand.hbm [shape: s32[1], index: 15, kind: output, shape index: {2}]
  %16 = xla_tuple %s13, %s14, %s15
  %s17 = sld [smem:[#allocation0]]
  $region82: #{tpu_custom_call.1} parent=0
    _
  %s19 = ssub.s32 1, %s17
  %s20 = scalar_select 0, %s19, %s17
  %v21 = vstv %s9
  %22 = vst [vmem:[#allocation3] sm:$0x1] %v21
  %v23 = vstv %s11
  %24 = vst [vmem:[#allocation4] sm:$0x1] %v23
  %25 = sst [smem:[#allocation5]] %s12
  $region1: #{tpu_custom_call.1} parent=0
    #allocation6 [shape = 'u8[589824]{0}', space=vmem, size = 0x90000, scoped, tag = 'input window, operand 1, single buffered']
    #allocation7 [shape = 's32[1]{0}', space=sflag, size = 0x4, scoped, tag = 'scoped memory for tpu_custom_call.1']
    #allocation8 [shape = 's32[1]{0}', space=sflag, size = 0x4, scoped, tag = 'scoped memory for tpu_custom_call.1']
    #allocation9 [shape = 's32[1]{0}', space=sflag, size = 0x4, scoped, tag = 'scoped memory for tpu_custom_call.1']
    #allocation10 [shape = 'u8[512]{0}', space=vmem, size = 0x400, scoped, tag = 'output window, operand 0, single buffered']
    #allocation11 [shape = 'u8[512]{0}', space=vmem, size = 0x400, scoped, tag = 'output window, operand 1, single buffered']
    #allocation12 [shape = 's32[1]{0}', space=sflag, size = 0x4, scoped, tag = 'scoped memory for tpu_custom_call.1']
    #allocation13 [shape = 'u8[512]{0}', space=smem, size = 0x200, scoped, tag = 'output window, operand 2, single buffered']
    %26 = vsyncpa [#allocation7], 0
    %27 = vsyncpa [#allocation8], 0
    %28 = vsyncpa [#allocation12], 0
    %29 = vsyncpa [#allocation9], 0
    // Predicated region
    $region2: #{tpu_custom_call.1} parent=1 // pred_check
      _
    $region3: #{tpu_custom_call.1} parent=1 // pred_check_branch
      %31 = sbr.rel (0) target = $region5
    $region4: #{tpu_custom_call.1} parent=1 // pred_region
      _
    $region5: #{tpu_custom_call.1} parent=1 // pred_fallthru
      _
    // Predicated region
    $region6: #{tpu_custom_call.1} parent=1 // pred_check
      _
    $region7: #{tpu_custom_call.1} parent=1 // pred_check_branch
      %33 = sbr.rel (0) target = $region9
    $region8: #{tpu_custom_call.1} parent=1 // pred_region
      %35 = vsyncadd [#allocation7], 0
      %s36 = sshll.u32 %s1, 4
      %s37 = int_to_ptr.hbm [resolvable:$true] %s36
      %s38 = sshll.u32 [#allocation6], 4
      %s39 = int_to_ptr.vmem [resolvable:$true] %s38
      %44 = dma.hbm_to_vmem [thread:$0]  %s37, 18432, %s39, [#allocation7], 192, 192, 12
    $region9: #{tpu_custom_call.1} parent=1 // pred_fallthru
      _
    // Predicated region
    $region10: #{tpu_custom_call.1} parent=1 // pred_check
      _
    $region11: #{tpu_custom_call.1} parent=1 // pred_check_branch
      %46 = sbr.rel (0) target = $region13
    $region12: #{tpu_custom_call.1} parent=1 // pred_region
      _
    $region13: #{tpu_custom_call.1} parent=1 // pred_fallthru
      _
    // Predicated region
    $region14: #{tpu_custom_call.1} parent=1 // pred_check
      _
    $region15: #{tpu_custom_call.1} parent=1 // pred_check_branch
      %48 = sbr.rel (0) target = $region17
    $region16: #{tpu_custom_call.1} parent=1 // pred_region
      _
    $region17: #{tpu_custom_call.1} parent=1 // pred_fallthru
      _
    // Predicated region
    $region18: #{tpu_custom_call.1} parent=1 // pred_check
      _
    $region19: #{tpu_custom_call.1} parent=1 // pred_check_branch
      %50 = sbr.rel (0) target = $region21
    $region20: #{tpu_custom_call.1} parent=1 // pred_region
      _
    $region21: #{tpu_custom_call.1} parent=1 // pred_fallthru
      _
    // Predicated region
    $region22: #{tpu_custom_call.1} parent=1 // pred_check
      _
    $region23: #{tpu_custom_call.1} parent=1 // pred_check_branch
      %52 = sbr.rel (0) target = $region25
    $region24: #{tpu_custom_call.1} parent=1 // pred_region
      _
    $region25: #{tpu_custom_call.1} parent=1 // pred_fallthru
      _
    // Predicated region
    $region26: #{tpu_custom_call.1} parent=1 // pred_check
      _
    $region27: #{tpu_custom_call.1} parent=1 // pred_check_branch
      %54 = sbr.rel (0) target = $region29
    $region28: #{tpu_custom_call.1} parent=1 // pred_region
      _
    $region29: #{tpu_custom_call.1} parent=1 // pred_fallthru
      _
    // Predicated region
    $region30: #{tpu_custom_call.1} parent=1 // pred_check
      _
    $region31: #{tpu_custom_call.1} parent=1 // pred_check_branch
      %56 = sbr.rel (0) target = $region33
    $region32: #{tpu_custom_call.1} parent=1 // pred_region
      _
    $region33: #{tpu_custom_call.1} parent=1 // pred_fallthru
      _
    // Predicated region
    $region34: #{tpu_custom_call.1} parent=1 // pred_check
      _
    $region35: #{tpu_custom_call.1} parent=1 // pred_check_branch
      %58 = sbr.rel (0) target = $region37
    $region36: #{tpu_custom_call.1} parent=1 // pred_region
      _
    $region37: #{tpu_custom_call.1} parent=1 // pred_fallthru
      _
    // Predicated region
    $region38: #{tpu_custom_call.1} parent=1 // pred_check
      _
    $region39: #{tpu_custom_call.1} parent=1 // pred_check_branch
      %60 = sbr.rel (0) target = $region41
    $region40: #{tpu_custom_call.1} parent=1 // pred_region
      _
    $region41: #{tpu_custom_call.1} parent=1 // pred_fallthru
      _
    // Predicated region
    $region42: #{tpu_custom_call.1} parent=1 // pred_check
      _
    $region43: #{tpu_custom_call.1} parent=1 // pred_check_branch
      %62 = sbr.rel (0) target = $region45
    $region44: #{tpu_custom_call.1} parent=1 // pred_region
      _
    $region45: #{tpu_custom_call.1} parent=1 // pred_fallthru
      _
    // Predicated region
    $region46: #{tpu_custom_call.1} parent=1 // pred_check
      _
    $region47: #{tpu_custom_call.1} parent=1 // pred_check_branch
      %64 = sbr.rel (0) target = $region49
    $region48: #{tpu_custom_call.1} parent=1 // pred_region
      _
    $region49: #{tpu_custom_call.1} parent=1 // pred_fallthru
      _
    // Predicated region
    $region50: #{tpu_custom_call.1} parent=1 // pred_check
      _
    $region51: #{tpu_custom_call.1} parent=1 // pred_check_branch
      %66 = sbr.rel (0) target = $region53
    $region52: #{tpu_custom_call.1} parent=1 // pred_region
      _
    $region53: #{tpu_custom_call.1} parent=1 // pred_fallthru
      _
    // Predicated region
    $region54: #{tpu_custom_call.1} parent=1 // pred_check
      _
    $region55: #{tpu_custom_call.1} parent=1 // pred_check_branch
      %68 = sbr.rel (0) target = $region57
    $region56: #{tpu_custom_call.1} parent=1 // pred_region
      %70 = dma.done [#allocation7], 18432
    $region57: #{tpu_custom_call.1} parent=1 // pred_fallthru
      _
    %v71 = vld [vmem:[%s0] sm:$0xff]
    %v72 = vld [vmem:[%s0 + $0x8] sm:$0xff]
    %v73 = vld [vmem:[%s0 + $0x10] sm:$0xff]
    %v74 = vld [vmem:[%s0 + $0x18] sm:$0xff]
    %v75 = vld [vmem:[%s0 + $0x20] sm:$0xff]
    %v76 = vld [vmem:[%s0 + $0x28] sm:$0xff]
    %v77 = vld [vmem:[%s0 + $0x30] sm:$0x7]
    %v78 = vld [vmem:[%s0 + $0x38] sm:$0x7]
    %v79 = vld [vmem:[%s0 + $0x40] sm:$0x7]
    %v80 = vld [vmem:[%s0 + $0x48] sm:$0x7]
    %v81 = vld [vmem:[%s0 + $0x50] sm:$0x7]
    %v82 = vld [vmem:[%s0 + $0x58] sm:$0x7]
    %v83 = vpack.c.bf16 %v77, %v71
    %v84 = vpack.c.bf16 %v78, %v72
    %v85 = vpack.c.bf16 %v79, %v73
    %v86 = vpack.c.bf16 %v80, %v74
    %v87 = vpack.c.bf16 %v81, %v75
    %v88 = vpack.c.bf16 %v82, %v76
    %v89 = vld [vmem:[#allocation6] sm:$0xff]
    %v90 = vld [vmem:[#allocation6 + $0x8] sm:$0xf]
    %v91 = vld [vmem:[#allocation6 + $0xc] sm:$0xff]
    %v92 = vld [vmem:[#allocation6 + $0x14] sm:$0xf]
    %v93 = vld [vmem:[#allocation6 + $0x18] sm:$0xff]
    %v94 = vld [vmem:[#allocation6 + $0x20] sm:$0xf]
    %v95 = vld [vmem:[#allocation6 + $0x24] sm:$0xff]
    %v96 = vld [vmem:[#allocation6 + $0x2c] sm:$0xf]
    %v97 = vld [vmem:[#allocation6 + $0x30] sm:$0xff]
    %v98 = vld [vmem:[#allocation6 + $0x38] sm:$0xf]
    %v99 = vld [vmem:[#allocation6 + $0x3c] sm:$0xff]
    %v100 = vld [vmem:[#allocation6 + $0x44] sm:$0xf]
    %v101 = vld [vmem:[#allocation6 + $0x48] sm:$0xff]
    %v102 = vld [vmem:[#allocation6 + $0x50] sm:$0xf]
    %v103 = vld [vmem:[#allocation6 + $0x54] sm:$0xff]
    %v104 = vld [vmem:[#allocation6 + $0x5c] sm:$0xf]
    %v105 = vld [vmem:[#allocation6 + $0x60] sm:$0xff]
    %v106 = vld [vmem:[#allocation6 + $0x68] sm:$0xf]
    %v107 = vld [vmem:[#allocation6 + $0x6c] sm:$0xff]
    %v108 = vld [vmem:[#allocation6 + $0x74] sm:$0xf]
    %v109 = vld [vmem:[#allocation6 + $0x78] sm:$0xff]
    %v110 = vld [vmem:[#allocation6 + $0x80] sm:$0xf]
    %v111 = vld [vmem:[#allocation6 + $0x84] sm:$0xff]
    %v112 = vld [vmem:[#allocation6 + $0x8c] sm:$0xf]
    %v113 = vld [vmem:[#allocation6 + $0x90] sm:$0xff]
    %v114 = vld [vmem:[#allocation6 + $0x98] sm:$0xf]
    %v115 = vld [vmem:[#allocation6 + $0x9c] sm:$0xff]
    %v116 = vld [vmem:[#allocation6 + $0xa4] sm:$0xf]
    %v117 = vld [vmem:[#allocation6 + $0xa8] sm:$0xff]
    %v118 = vld [vmem:[#allocation6 + $0xb0] sm:$0xf]
    %v119 = vld [vmem:[#allocation6 + $0xb4] sm:$0xff]
    %v120 = vld [vmem:[#allocation6 + $0xbc] sm:$0xf]
    %v121 = vld [vmem:[#allocation6 + $0xc0] sm:$0xff]
    %v122 = vld [vmem:[#allocation6 + $0xc8] sm:$0xf]
    %v123 = vld [vmem:[#allocation6 + $0xcc] sm:$0xff]
    %v124 = vld [vmem:[#allocation6 + $0xd4] sm:$0xf]
    %v125 = vld [vmem:[#allocation6 + $0xd8] sm:$0xff]
    %v126 = vld [vmem:[#allocation6 + $0xe0] sm:$0xf]
    %v127 = vld [vmem:[#allocation6 + $0xe4] sm:$0xff]
    %v128 = vld [vmem:[#allocation6 + $0xec] sm:$0xf]
    %v129 = vld [vmem:[#allocation6 + $0xf0] sm:$0xff]
    %v130 = vld [vmem:[#allocation6 + $0xf8] sm:$0xf]
    %v131 = vld [vmem:[#allocation6 + $0xfc] sm:$0xff]
    %v132 = vld [vmem:[#allocation6 + $0x104] sm:$0xf]
    %v133 = vld [vmem:[#allocation6 + $0x108] sm:$0xff]
    %v134 = vld [vmem:[#allocation6 + $0x110] sm:$0xf]
    %v135 = vld [vmem:[#allocation6 + $0x114] sm:$0xff]
    %v136 = vld [vmem:[#allocation6 + $0x11c] sm:$0xf]
    %v137 = vld [vmem:[#allocation6 + $0x120] sm:$0xff]
    %v138 = vld [vmem:[#allocation6 + $0x128] sm:$0xf]
    %v139 = vld [vmem:[#allocation6 + $0x12c] sm:$0xff]
    %v140 = vld [vmem:[#allocation6 + $0x134] sm:$0xf]
    %v141 = vld [vmem:[#allocation6 + $0x138] sm:$0xff]
    %v142 = vld [vmem:[#allocation6 + $0x140] sm:$0xf]
    %v143 = vld [vmem:[#allocation6 + $0x144] sm:$0xff]
    %v144 = vld [vmem:[#allocation6 + $0x14c] sm:$0xf]
    %v145 = vld [vmem:[#allocation6 + $0x150] sm:$0xff]
    %v146 = vld [vmem:[#allocation6 + $0x158] sm:$0xf]
    %v147 = vld [vmem:[#allocation6 + $0x15c] sm:$0xff]
    %v148 = vld [vmem:[#allocation6 + $0x164] sm:$0xf]
    %v149 = vld [vmem:[#allocation6 + $0x168] sm:$0xff]
    %v150 = vld [vmem:[#allocation6 + $0x170] sm:$0xf]
    %v151 = vld [vmem:[#allocation6 + $0x174] sm:$0xff]
    %v152 = vld [vmem:[#allocation6 + $0x17c] sm:$0xf]
    %v153 = vld [vmem:[#allocation6 + $0x180] sm:$0xff]
    %v154 = vld [vmem:[#allocation6 + $0x188] sm:$0xf]
    %v155 = vld [vmem:[#allocation6 + $0x18c] sm:$0xff]
    %v156 = vld [vmem:[#allocation6 + $0x194] sm:$0xf]
    %v157 = vld [vmem:[#allocation6 + $0x198] sm:$0xff]
    %v158 = vld [vmem:[#allocation6 + $0x1a0] sm:$0xf]
    %v159 = vld [vmem:[#allocation6 + $0x1a4] sm:$0xff]
    %v160 = vld [vmem:[#allocation6 + $0x1ac] sm:$0xf]
    %v161 = vld [vmem:[#allocation6 + $0x1b0] sm:$0xff]
    %v162 = vld [vmem:[#allocation6 + $0x1b8] sm:$0xf]
    %v163 = vld [vmem:[#allocation6 + $0x1bc] sm:$0xff]
    %v164 = vld [vmem:[#allocation6 + $0x1c4] sm:$0xf]
    %v165 = vld [vmem:[#allocation6 + $0x1c8] sm:$0xff]
    %v166 = vld [vmem:[#allocation6 + $0x1d0] sm:$0xf]
    %v167 = vld [vmem:[#allocation6 + $0x1d4] sm:$0xff]
    %v168 = vld [vmem:[#allocation6 + $0x1dc] sm:$0xf]
    %v169 = vld [vmem:[#allocation6 + $0x1e0] sm:$0xff]
    %v170 = vld [vmem:[#allocation6 + $0x1e8] sm:$0xf]
    %v171 = vld [vmem:[#allocation6 + $0x1ec] sm:$0xff]
    %v172 = vld [vmem:[#allocation6 + $0x1f4] sm:$0xf]
    %v173 = vld [vmem:[#allocation6 + $0x1f8] sm:$0xff]
    %v174 = vld [vmem:[#allocation6 + $0x200] sm:$0xf]
    %v175 = vld [vmem:[#allocation6 + $0x204] sm:$0xff]
    %v176 = vld [vmem:[#allocation6 + $0x20c] sm:$0xf]
    %v177 = vld [vmem:[#allocation6 + $0x210] sm:$0xff]
    %v178 = vld [vmem:[#allocation6 + $0x218] sm:$0xf]
    %v179 = vld [vmem:[#allocation6 + $0x21c] sm:$0xff]
    %v180 = vld [vmem:[#allocation6 + $0x224] sm:$0xf]
    %v181 = vld [vmem:[#allocation6 + $0x228] sm:$0xff]
    %v182 = vld [vmem:[#allocation6 + $0x230] sm:$0xf]
    %v183 = vld [vmem:[#allocation6 + $0x234] sm:$0xff]
    %v184 = vld [vmem:[#allocation6 + $0x23c] sm:$0xf]
    %v185 = vld [vmem:[#allocation6 + $0x240] sm:$0xff]
    %v186 = vld [vmem:[#allocation6 + $0x248] sm:$0xf]
    %v187 = vld [vmem:[#allocation6 + $0x24c] sm:$0xff]
    %v188 = vld [vmem:[#allocation6 + $0x254] sm:$0xf]
    %v189 = vld [vmem:[#allocation6 + $0x258] sm:$0xff]
    %v190 = vld [vmem:[#allocation6 + $0x260] sm:$0xf]
    %v191 = vld [vmem:[#allocation6 + $0x264] sm:$0xff]
    %v192 = vld [vmem:[#allocation6 + $0x26c] sm:$0xf]
    %v193 = vld [vmem:[#allocation6 + $0x270] sm:$0xff]
    %v194 = vld [vmem:[#allocation6 + $0x278] sm:$0xf]
    %v195 = vld [vmem:[#allocation6 + $0x27c] sm:$0xff]
    %v196 = vld [vmem:[#allocation6 + $0x284] sm:$0xf]
    %v197 = vld [vmem:[#allocation6 + $0x288] sm:$0xff]
    %v198 = vld [vmem:[#allocation6 + $0x290] sm:$0xf]
    %v199 = vld [vmem:[#allocation6 + $0x294] sm:$0xff]
    %v200 = vld [vmem:[#allocation6 + $0x29c] sm:$0xf]
    %v201 = vld [vmem:[#allocation6 + $0x2a0] sm:$0xff]
    %v202 = vld [vmem:[#allocation6 + $0x2a8] sm:$0xf]
    %v203 = vld [vmem:[#allocation6 + $0x2ac] sm:$0xff]
    %v204 = vld [vmem:[#allocation6 + $0x2b4] sm:$0xf]
    %v205 = vld [vmem:[#allocation6 + $0x2b8] sm:$0xff]
    %v206 = vld [vmem:[#allocation6 + $0x2c0] sm:$0xf]
    %v207 = vld [vmem:[#allocation6 + $0x2c4] sm:$0xff]
    %v208 = vld [vmem:[#allocation6 + $0x2cc] sm:$0xf]
    %v209 = vld [vmem:[#allocation6 + $0x2d0] sm:$0xff]
    %v210 = vld [vmem:[#allocation6 + $0x2d8] sm:$0xf]
    %v211 = vld [vmem:[#allocation6 + $0x2dc] sm:$0xff]
    %v212 = vld [vmem:[#allocation6 + $0x2e4] sm:$0xf]
    %v213 = vld [vmem:[#allocation6 + $0x2e8] sm:$0xff]
    %v214 = vld [vmem:[#allocation6 + $0x2f0] sm:$0xf]
    %v215 = vld [vmem:[#allocation6 + $0x2f4] sm:$0xff]
    %v216 = vld [vmem:[#allocation6 + $0x2fc] sm:$0xf]
    %v217 = vld [vmem:[#allocation6 + $0x300] sm:$0xff]
    %v218 = vld [vmem:[#allocation6 + $0x308] sm:$0xf]
    %v219 = vld [vmem:[#allocation6 + $0x30c] sm:$0xff]
    %v220 = vld [vmem:[#allocation6 + $0x314] sm:$0xf]
    %v221 = vld [vmem:[#allocation6 + $0x318] sm:$0xff]
    %v222 = vld [vmem:[#allocation6 + $0x320] sm:$0xf]
    %v223 = vld [vmem:[#allocation6 + $0x324] sm:$0xff]
    %v224 = vld [vmem:[#allocation6 + $0x32c] sm:$0xf]
    %v225 = vld [vmem:[#allocation6 + $0x330] sm:$0xff]
    %v226 = vld [vmem:[#allocation6 + $0x338] sm:$0xf]
    %v227 = vld [vmem:[#allocation6 + $0x33c] sm:$0xff]
    %v228 = vld [vmem:[#allocation6 + $0x344] sm:$0xf]
    %v229 = vld [vmem:[#allocation6 + $0x348] sm:$0xff]
    %v230 = vld [vmem:[#allocation6 + $0x350] sm:$0xf]
    %v231 = vld [vmem:[#allocation6 + $0x354] sm:$0xff]
    %v232 = vld [vmem:[#allocation6 + $0x35c] sm:$0xf]
    %v233 = vld [vmem:[#allocation6 + $0x360] sm:$0xff]
    %v234 = vld [vmem:[#allocation6 + $0x368] sm:$0xf]
    %v235 = vld [vmem:[#allocation6 + $0x36c] sm:$0xff]
    %v236 = vld [vmem:[#allocation6 + $0x374] sm:$0xf]
    %v237 = vld [vmem:[#allocation6 + $0x378] sm:$0xff]
    %v238 = vld [vmem:[#allocation6 + $0x380] sm:$0xf]
    %v239 = vld [vmem:[#allocation6 + $0x384] sm:$0xff]
    %v240 = vld [vmem:[#allocation6 + $0x38c] sm:$0xf]
    %v241 = vld [vmem:[#allocation6 + $0x390] sm:$0xff]
    %v242 = vld [vmem:[#allocation6 + $0x398] sm:$0xf]
    %v243 = vld [vmem:[#allocation6 + $0x39c] sm:$0xff]
    %v244 = vld [vmem:[#allocation6 + $0x3a4] sm:$0xf]
    %v245 = vld [vmem:[#allocation6 + $0x3a8] sm:$0xff]
    %v246 = vld [vmem:[#allocation6 + $0x3b0] sm:$0xf]
    %v247 = vld [vmem:[#allocation6 + $0x3b4] sm:$0xff]
    %v248 = vld [vmem:[#allocation6 + $0x3bc] sm:$0xf]
    %v249 = vld [vmem:[#allocation6 + $0x3c0] sm:$0xff]
    %v250 = vld [vmem:[#allocation6 + $0x3c8] sm:$0xf]
    %v251 = vld [vmem:[#allocation6 + $0x3cc] sm:$0xff]
    %v252 = vld [vmem:[#allocation6 + $0x3d4] sm:$0xf]
    %v253 = vld [vmem:[#allocation6 + $0x3d8] sm:$0xff]
    %v254 = vld [vmem:[#allocation6 + $0x3e0] sm:$0xf]
    %v255 = vld [vmem:[#allocation6 + $0x3e4] sm:$0xff]
    %v256 = vld [vmem:[#allocation6 + $0x3ec] sm:$0xf]
    %v257 = vld [vmem:[#allocation6 + $0x3f0] sm:$0xff]
    %v258 = vld [vmem:[#allocation6 + $0x3f8] sm:$0xf]
    %v259 = vld [vmem:[#allocation6 + $0x3fc] sm:$0xff]
    %v260 = vld [vmem:[#allocation6 + $0x404] sm:$0xf]
    %v261 = vld [vmem:[#allocation6 + $0x408] sm:$0xff]
    %v262 = vld [vmem:[#allocation6 + $0x410] sm:$0xf]
    %v263 = vld [vmem:[#allocation6 + $0x414] sm:$0xff]
    %v264 = vld [vmem:[#allocation6 + $0x41c] sm:$0xf]
    %v265 = vld [vmem:[#allocation6 + $0x420] sm:$0xff]
    %v266 = vld [vmem:[#allocation6 + $0x428] sm:$0xf]
    %v267 = vld [vmem:[#allocation6 + $0x42c] sm:$0xff]
    %v268 = vld [vmem:[#allocation6 + $0x434] sm:$0xf]
    %v269 = vld [vmem:[#allocation6 + $0x438] sm:$0xff]
    %v270 = vld [vmem:[#allocation6 + $0x440] sm:$0xf]
    %v271 = vld [vmem:[#allocation6 + $0x444] sm:$0xff]
    %v272 = vld [vmem:[#allocation6 + $0x44c] sm:$0xf]
    %v273 = vld [vmem:[#allocation6 + $0x450] sm:$0xff]
    %v274 = vld [vmem:[#allocation6 + $0x458] sm:$0xf]
    %v275 = vld [vmem:[#allocation6 + $0x45c] sm:$0xff]
    %v276 = vld [vmem:[#allocation6 + $0x464] sm:$0xf]
    %v277 = vld [vmem:[#allocation6 + $0x468] sm:$0xff]
    %v278 = vld [vmem:[#allocation6 + $0x470] sm:$0xf]
    %v279 = vld [vmem:[#allocation6 + $0x474] sm:$0xff]
    %v280 = vld [vmem:[#allocation6 + $0x47c] sm:$0xf]
    %v281 = vld [vmem:[%s2] sm:$0x7]
    %v283 = vperm.slane %v281, 0
    %v284 = vperm.slane %v281, 1
    %v285 = vperm.slane %v281, 2
    %v481 = vunpack.c.l.b16 %v89
    %v482 = vunpack.c.h.b16 %v89
    %v483 = vunpack.c.l.b16 %v90
    %v484 = vunpack.c.l.b16 %v91
    %v485 = vunpack.c.h.b16 %v91
    %v486 = vunpack.c.l.b16 %v92
    %v487 = vunpack.c.l.b16 %v93
    %v488 = vunpack.c.h.b16 %v93
    %v489 = vunpack.c.l.b16 %v94
    %v490 = vunpack.c.l.b16 %v95
    %v491 = vunpack.c.h.b16 %v95
    %v492 = vunpack.c.l.b16 %v96
    %v493 = vunpack.c.l.b16 %v97
    %v494 = vunpack.c.h.b16 %v97
    %v495 = vunpack.c.l.b16 %v98
    %v496 = vunpack.c.l.b16 %v99
    %v497 = vunpack.c.h.b16 %v99
    %v498 = vunpack.c.l.b16 %v100
    %v499 = vunpack.c.l.b16 %v101
    %v500 = vunpack.c.h.b16 %v101
    %v501 = vunpack.c.l.b16 %v102
    %v502 = vunpack.c.l.b16 %v103
    %v503 = vunpack.c.h.b16 %v103
    %v504 = vunpack.c.l.b16 %v104
    %v505 = vunpack.c.l.b16 %v105
    %v506 = vunpack.c.h.b16 %v105
    %v507 = vunpack.c.l.b16 %v106
    %v508 = vunpack.c.l.b16 %v107
    %v509 = vunpack.c.h.b16 %v107
    %v510 = vunpack.c.l.b16 %v108
    %v511 = vunpack.c.l.b16 %v109
    %v512 = vunpack.c.h.b16 %v109
    %v513 = vunpack.c.l.b16 %v110
    %v514 = vunpack.c.l.b16 %v111
    %v515 = vunpack.c.h.b16 %v111
    %v516 = vunpack.c.l.b16 %v112
    %v517 = vunpack.c.l.b16 %v113
    %v518 = vunpack.c.h.b16 %v113
    %v519 = vunpack.c.l.b16 %v114
    %v520 = vunpack.c.l.b16 %v115
    %v521 = vunpack.c.h.b16 %v115
    %v522 = vunpack.c.l.b16 %v116
    %v523 = vunpack.c.l.b16 %v117
    %v524 = vunpack.c.h.b16 %v117
    %v525 = vunpack.c.l.b16 %v118
    %v526 = vunpack.c.l.b16 %v119
    %v527 = vunpack.c.h.b16 %v119
    %v528 = vunpack.c.l.b16 %v120
    %v529 = vunpack.c.l.b16 %v121
    %v530 = vunpack.c.h.b16 %v121
    %v531 = vunpack.c.l.b16 %v122
    %v532 = vunpack.c.l.b16 %v123
    %v533 = vunpack.c.h.b16 %v123
    %v534 = vunpack.c.l.b16 %v124
    %v535 = vunpack.c.l.b16 %v125
    %v536 = vunpack.c.h.b16 %v125
    %v537 = vunpack.c.l.b16 %v126
    %v538 = vunpack.c.l.b16 %v127
    %v539 = vunpack.c.h.b16 %v127
    %v540 = vunpack.c.l.b16 %v128
    %v541 = vunpack.c.l.b16 %v129
    %v542 = vunpack.c.h.b16 %v129
    %v543 = vunpack.c.l.b16 %v130
    %v544 = vunpack.c.l.b16 %v131
    %v545 = vunpack.c.h.b16 %v131
    %v546 = vunpack.c.l.b16 %v132
    %v547 = vunpack.c.l.b16 %v133
    %v548 = vunpack.c.h.b16 %v133
    %v549 = vunpack.c.l.b16 %v134
    %v550 = vunpack.c.l.b16 %v135
    %v551 = vunpack.c.h.b16 %v135
    %v552 = vunpack.c.l.b16 %v136
    %v553 = vunpack.c.l.b16 %v137
    %v554 = vunpack.c.h.b16 %v137
    %v555 = vunpack.c.l.b16 %v138
    %v556 = vunpack.c.l.b16 %v139
    %v557 = vunpack.c.h.b16 %v139
    %v558 = vunpack.c.l.b16 %v140
    %v559 = vunpack.c.l.b16 %v141
    %v560 = vunpack.c.h.b16 %v141
    %v561 = vunpack.c.l.b16 %v142
    %v562 = vunpack.c.l.b16 %v143
    %v563 = vunpack.c.h.b16 %v143
    %v564 = vunpack.c.l.b16 %v144
    %v565 = vunpack.c.l.b16 %v145
    %v566 = vunpack.c.h.b16 %v145
    %v567 = vunpack.c.l.b16 %v146
    %v568 = vunpack.c.l.b16 %v147
    %v569 = vunpack.c.h.b16 %v147
    %v570 = vunpack.c.l.b16 %v148
    %v571 = vunpack.c.l.b16 %v149
    %v572 = vunpack.c.h.b16 %v149
    %v573 = vunpack.c.l.b16 %v150
    %v574 = vunpack.c.l.b16 %v151
    %v575 = vunpack.c.h.b16 %v151
    %v576 = vunpack.c.l.b16 %v152
    %v577 = vunpack.c.l.b16 %v153
    %v578 = vunpack.c.h.b16 %v153
    %v579 = vunpack.c.l.b16 %v154
    %v580 = vunpack.c.l.b16 %v155
    %v581 = vunpack.c.h.b16 %v155
    %v582 = vunpack.c.l.b16 %v156
    %v583 = vunpack.c.l.b16 %v157
    %v584 = vunpack.c.h.b16 %v157
    %v585 = vunpack.c.l.b16 %v158
    %v586 = vunpack.c.l.b16 %v159
    %v587 = vunpack.c.h.b16 %v159
    %v588 = vunpack.c.l.b16 %v160
    %v589 = vunpack.c.l.b16 %v161
    %v590 = vunpack.c.h.b16 %v161
    %v591 = vunpack.c.l.b16 %v162
    %v592 = vunpack.c.l.b16 %v163
    %v593 = vunpack.c.h.b16 %v163
    %v594 = vunpack.c.l.b16 %v164
    %v595 = vunpack.c.l.b16 %v165
    %v596 = vunpack.c.h.b16 %v165
    %v597 = vunpack.c.l.b16 %v166
    %v598 = vunpack.c.l.b16 %v167
    %v599 = vunpack.c.h.b16 %v167
    %v600 = vunpack.c.l.b16 %v168
    %v601 = vunpack.c.l.b16 %v169
    %v602 = vunpack.c.h.b16 %v169
    %v603 = vunpack.c.l.b16 %v170
    %v604 = vunpack.c.l.b16 %v171
    %v605 = vunpack.c.h.b16 %v171
    %v606 = vunpack.c.l.b16 %v172
    %v607 = vunpack.c.l.b16 %v173
    %v608 = vunpack.c.h.b16 %v173
    %v609 = vunpack.c.l.b16 %v174
    %v610 = vunpack.c.l.b16 %v175
    %v611 = vunpack.c.h.b16 %v175
    %v612 = vunpack.c.l.b16 %v176
    %v613 = vunpack.c.l.b16 %v177
    %v614 = vunpack.c.h.b16 %v177
    %v615 = vunpack.c.l.b16 %v178
    %v616 = vunpack.c.l.b16 %v179
    %v617 = vunpack.c.h.b16 %v179
    %v618 = vunpack.c.l.b16 %v180
    %v619 = vunpack.c.l.b16 %v181
    %v620 = vunpack.c.h.b16 %v181
    %v621 = vunpack.c.l.b16 %v182
    %v622 = vunpack.c.l.b16 %v183
    %v623 = vunpack.c.h.b16 %v183
    %v624 = vunpack.c.l.b16 %v184
    %v625 = vunpack.c.l.b16 %v185
    %v626 = vunpack.c.h.b16 %v185
    %v627 = vunpack.c.l.b16 %v186
    %v628 = vunpack.c.l.b16 %v187
    %v629 = vunpack.c.h.b16 %v187
    %v630 = vunpack.c.l.b16 %v188
    %v631 = vunpack.c.l.b16 %v189
    %v632 = vunpack.c.h.b16 %v189
    %v633 = vunpack.c.l.b16 %v190
    %v634 = vunpack.c.l.b16 %v191
    %v635 = vunpack.c.h.b16 %v191
    %v636 = vunpack.c.l.b16 %v192
    %v637 = vunpack.c.l.b16 %v193
    %v638 = vunpack.c.h.b16 %v193
    %v639 = vunpack.c.l.b16 %v194
    %v640 = vunpack.c.l.b16 %v195
    %v641 = vunpack.c.h.b16 %v195
    %v642 = vunpack.c.l.b16 %v196
    %v643 = vunpack.c.l.b16 %v197
    %v644 = vunpack.c.h.b16 %v197
    %v645 = vunpack.c.l.b16 %v198
    %v646 = vunpack.c.l.b16 %v199
    %v647 = vunpack.c.h.b16 %v199
    %v648 = vunpack.c.l.b16 %v200
    %v649 = vunpack.c.l.b16 %v201
    %v650 = vunpack.c.h.b16 %v201
    %v651 = vunpack.c.l.b16 %v202
    %v652 = vunpack.c.l.b16 %v203
    %v653 = vunpack.c.h.b16 %v203
    %v654 = vunpack.c.l.b16 %v204
    %v655 = vunpack.c.l.b16 %v205
    %v656 = vunpack.c.h.b16 %v205
    %v657 = vunpack.c.l.b16 %v206
    %v658 = vunpack.c.l.b16 %v207
    %v659 = vunpack.c.h.b16 %v207
    %v660 = vunpack.c.l.b16 %v208
    %v661 = vunpack.c.l.b16 %v209
    %v662 = vunpack.c.h.b16 %v209
    %v663 = vunpack.c.l.b16 %v210
    %v664 = vunpack.c.l.b16 %v211
    %v665 = vunpack.c.h.b16 %v211
    %v666 = vunpack.c.l.b16 %v212
    %v667 = vunpack.c.l.b16 %v213
    %v668 = vunpack.c.h.b16 %v213
    %v669 = vunpack.c.l.b16 %v214
    %v670 = vunpack.c.l.b16 %v215
    %v671 = vunpack.c.h.b16 %v215
    %v672 = vunpack.c.l.b16 %v216
    %v673 = vunpack.c.l.b16 %v217
    %v674 = vunpack.c.h.b16 %v217
    %v675 = vunpack.c.l.b16 %v218
    %v676 = vunpack.c.l.b16 %v219
    %v677 = vunpack.c.h.b16 %v219
    %v678 = vunpack.c.l.b16 %v220
    %v679 = vunpack.c.l.b16 %v221
    %v680 = vunpack.c.h.b16 %v221
    %v681 = vunpack.c.l.b16 %v222
    %v682 = vunpack.c.l.b16 %v223
    %v683 = vunpack.c.h.b16 %v223
    %v684 = vunpack.c.l.b16 %v224
    %v685 = vunpack.c.l.b16 %v225
    %v686 = vunpack.c.h.b16 %v225
    %v687 = vunpack.c.l.b16 %v226
    %v688 = vunpack.c.l.b16 %v227
    %v689 = vunpack.c.h.b16 %v227
    %v690 = vunpack.c.l.b16 %v228
    %v691 = vunpack.c.l.b16 %v229
    %v692 = vunpack.c.h.b16 %v229
    %v693 = vunpack.c.l.b16 %v230
    %v694 = vunpack.c.l.b16 %v231
    %v695 = vunpack.c.h.b16 %v231
    %v696 = vunpack.c.l.b16 %v232
    %v697 = vunpack.c.l.b16 %v233
    %v698 = vunpack.c.h.b16 %v233
    %v699 = vunpack.c.l.b16 %v234
    %v700 = vunpack.c.l.b16 %v235
    %v701 = vunpack.c.h.b16 %v235
    %v702 = vunpack.c.l.b16 %v236
    %v703 = vunpack.c.l.b16 %v237
    %v704 = vunpack.c.h.b16 %v237
    %v705 = vunpack.c.l.b16 %v238
    %v706 = vunpack.c.l.b16 %v239
    %v707 = vunpack.c.h.b16 %v239
    %v708 = vunpack.c.l.b16 %v240
    %v709 = vunpack.c.l.b16 %v241
    %v710 = vunpack.c.h.b16 %v241
    %v711 = vunpack.c.l.b16 %v242
    %v712 = vunpack.c.l.b16 %v243
    %v713 = vunpack.c.h.b16 %v243
    %v714 = vunpack.c.l.b16 %v244
    %v715 = vunpack.c.l.b16 %v245
    %v716 = vunpack.c.h.b16 %v245
    %v717 = vunpack.c.l.b16 %v246
    %v718 = vunpack.c.l.b16 %v247
    %v719 = vunpack.c.h.b16 %v247
    %v720 = vunpack.c.l.b16 %v248
    %v721 = vunpack.c.l.b16 %v249
    %v722 = vunpack.c.h.b16 %v249
    %v723 = vunpack.c.l.b16 %v250
    %v724 = vunpack.c.l.b16 %v251
    %v725 = vunpack.c.h.b16 %v251
    %v726 = vunpack.c.l.b16 %v252
    %v727 = vunpack.c.l.b16 %v253
    %v728 = vunpack.c.h.b16 %v253
    %v729 = vunpack.c.l.b16 %v254
    %v730 = vunpack.c.l.b16 %v255
    %v731 = vunpack.c.h.b16 %v255
    %v732 = vunpack.c.l.b16 %v256
    %v733 = vunpack.c.l.b16 %v257
    %v734 = vunpack.c.h.b16 %v257
    %v735 = vunpack.c.l.b16 %v258
    %v736 = vunpack.c.l.b16 %v259
    %v737 = vunpack.c.h.b16 %v259
    %v738 = vunpack.c.l.b16 %v260
    %v739 = vunpack.c.l.b16 %v261
    %v740 = vunpack.c.h.b16 %v261
    %v741 = vunpack.c.l.b16 %v262
    %v742 = vunpack.c.l.b16 %v263
    %v743 = vunpack.c.h.b16 %v263
    %v744 = vunpack.c.l.b16 %v264
    %v745 = vunpack.c.l.b16 %v265
    %v746 = vunpack.c.h.b16 %v265
    %v747 = vunpack.c.l.b16 %v266
    %v748 = vunpack.c.l.b16 %v267
    %v749 = vunpack.c.h.b16 %v267
    %v750 = vunpack.c.l.b16 %v268
    %v751 = vunpack.c.l.b16 %v269
    %v752 = vunpack.c.h.b16 %v269
    %v753 = vunpack.c.l.b16 %v270
    %v754 = vunpack.c.l.b16 %v271
    %v755 = vunpack.c.h.b16 %v271
    %v756 = vunpack.c.l.b16 %v272
    %v757 = vunpack.c.l.b16 %v273
    %v758 = vunpack.c.h.b16 %v273
    %v759 = vunpack.c.l.b16 %v274
    %v760 = vunpack.c.l.b16 %v275
    %v761 = vunpack.c.h.b16 %v275
    %v762 = vunpack.c.l.b16 %v276
    %v763 = vunpack.c.l.b16 %v277
    %v764 = vunpack.c.h.b16 %v277
    %v765 = vunpack.c.l.b16 %v278
    %v766 = vunpack.c.l.b16 %v279
    %v767 = vunpack.c.h.b16 %v279
    %v768 = vunpack.c.l.b16 %v280
    %v769 = vpack.c.b16 %v484, %v481
    %v770 = vpack.c.b16 %v485, %v482
    %v771 = vpack.c.b16 %v486, %v483
    %v772 = vpack.c.b16 %v490, %v487
    %v773 = vpack.c.b16 %v491, %v488
    %v774 = vpack.c.b16 %v492, %v489
    %v775 = vpack.c.b16 %v496, %v493
    %v776 = vpack.c.b16 %v497, %v494
    %v777 = vpack.c.b16 %v498, %v495
    %v778 = vpack.c.b16 %v502, %v499
    %v779 = vpack.c.b16 %v503, %v500
    %v780 = vpack.c.b16 %v504, %v501
    %v781 = vpack.c.b16 %v508, %v505
    %v782 = vpack.c.b16 %v509, %v506
    %v783 = vpack.c.b16 %v510, %v507
    %v784 = vpack.c.b16 %v514, %v511
    %v785 = vpack.c.b16 %v515, %v512
    %v786 = vpack.c.b16 %v516, %v513
    %v787 = vpack.c.b16 %v520, %v517
    %v788 = vpack.c.b16 %v521, %v518
    %v789 = vpack.c.b16 %v522, %v519
    %v790 = vpack.c.b16 %v526, %v523
    %v791 = vpack.c.b16 %v527, %v524
    %v792 = vpack.c.b16 %v528, %v525
    %v793 = vpack.c.b16 %v532, %v529
    %v794 = vpack.c.b16 %v533, %v530
    %v795 = vpack.c.b16 %v534, %v531
    %v796 = vpack.c.b16 %v538, %v535
    %v797 = vpack.c.b16 %v539, %v536
    %v798 = vpack.c.b16 %v540, %v537
    %v799 = vpack.c.b16 %v544, %v541
    %v800 = vpack.c.b16 %v545, %v542
    %v801 = vpack.c.b16 %v546, %v543
    %v802 = vpack.c.b16 %v550, %v547
    %v803 = vpack.c.b16 %v551, %v548
    %v804 = vpack.c.b16 %v552, %v549
    %v805 = vpack.c.b16 %v556, %v553
    %v806 = vpack.c.b16 %v557, %v554
    %v807 = vpack.c.b16 %v558, %v555
    %v808 = vpack.c.b16 %v562, %v559
    %v809 = vpack.c.b16 %v563, %v560
    %v810 = vpack.c.b16 %v564, %v561
    %v811 = vpack.c.b16 %v568, %v565
    %v812 = vpack.c.b16 %v569, %v566
    %v813 = vpack.c.b16 %v570, %v567
    %v814 = vpack.c.b16 %v574, %v571
    %v815 = vpack.c.b16 %v575, %v572
    %v816 = vpack.c.b16 %v576, %v573
    %v817 = vpack.c.b16 %v580, %v577
    %v818 = vpack.c.b16 %v581, %v578
    %v819 = vpack.c.b16 %v582, %v579
    %v820 = vpack.c.b16 %v586, %v583
    %v821 = vpack.c.b16 %v587, %v584
    %v822 = vpack.c.b16 %v588, %v585
    %v823 = vpack.c.b16 %v592, %v589
    %v824 = vpack.c.b16 %v593, %v590
    %v825 = vpack.c.b16 %v594, %v591
    %v826 = vpack.c.b16 %v598, %v595
    %v827 = vpack.c.b16 %v599, %v596
    %v828 = vpack.c.b16 %v600, %v597
    %v829 = vpack.c.b16 %v604, %v601
    %v830 = vpack.c.b16 %v605, %v602
    %v831 = vpack.c.b16 %v606, %v603
    %v832 = vpack.c.b16 %v610, %v607
    %v833 = vpack.c.b16 %v611, %v608
    %v834 = vpack.c.b16 %v612, %v609
    %v835 = vpack.c.b16 %v616, %v613
    %v836 = vpack.c.b16 %v617, %v614
    %v837 = vpack.c.b16 %v618, %v615
    %v838 = vpack.c.b16 %v622, %v619
    %v839 = vpack.c.b16 %v623, %v620
    %v840 = vpack.c.b16 %v624, %v621
    %v841 = vpack.c.b16 %v628, %v625
    %v842 = vpack.c.b16 %v629, %v626
    %v843 = vpack.c.b16 %v630, %v627
    %v844 = vpack.c.b16 %v634, %v631
    %v845 = vpack.c.b16 %v635, %v632
    %v846 = vpack.c.b16 %v636, %v633
    %v847 = vpack.c.b16 %v640, %v637
    %v848 = vpack.c.b16 %v641, %v638
    %v849 = vpack.c.b16 %v642, %v639
    %v850 = vpack.c.b16 %v646, %v643
    %v851 = vpack.c.b16 %v647, %v644
    %v852 = vpack.c.b16 %v648, %v645
    %v853 = vpack.c.b16 %v652, %v649
    %v854 = vpack.c.b16 %v653, %v650
    %v855 = vpack.c.b16 %v654, %v651
    %v856 = vpack.c.b16 %v658, %v655
    %v857 = vpack.c.b16 %v659, %v656
    %v858 = vpack.c.b16 %v660, %v657
    %v859 = vpack.c.b16 %v664, %v661
    %v860 = vpack.c.b16 %v665, %v662
    %v861 = vpack.c.b16 %v666, %v663
    %v862 = vpack.c.b16 %v670, %v667
    %v863 = vpack.c.b16 %v671, %v668
    %v864 = vpack.c.b16 %v672, %v669
    %v865 = vpack.c.b16 %v676, %v673
    %v866 = vpack.c.b16 %v677, %v674
    %v867 = vpack.c.b16 %v678, %v675
    %v868 = vpack.c.b16 %v682, %v679
    %v869 = vpack.c.b16 %v683, %v680
    %v870 = vpack.c.b16 %v684, %v681
    %v871 = vpack.c.b16 %v688, %v685
    %v872 = vpack.c.b16 %v689, %v686
    %v873 = vpack.c.b16 %v690, %v687
    %v874 = vpack.c.b16 %v694, %v691
    %v875 = vpack.c.b16 %v695, %v692
    %v876 = vpack.c.b16 %v696, %v693
    %v877 = vpack.c.b16 %v700, %v697
    %v878 = vpack.c.b16 %v701, %v698
    %v879 = vpack.c.b16 %v702, %v699
    %v880 = vpack.c.b16 %v706, %v703
    %v881 = vpack.c.b16 %v707, %v704
    %v882 = vpack.c.b16 %v708, %v705
    %v883 = vpack.c.b16 %v712, %v709
    %v884 = vpack.c.b16 %v713, %v710
    %v885 = vpack.c.b16 %v714, %v711
    %v886 = vpack.c.b16 %v718, %v715
    %v887 = vpack.c.b16 %v719, %v716
    %v888 = vpack.c.b16 %v720, %v717
    %v889 = vpack.c.b16 %v724, %v721
    %v890 = vpack.c.b16 %v725, %v722
    %v891 = vpack.c.b16 %v726, %v723
    %v892 = vpack.c.b16 %v730, %v727
    %v893 = vpack.c.b16 %v731, %v728
    %v894 = vpack.c.b16 %v732, %v729
    %v895 = vpack.c.b16 %v736, %v733
    %v896 = vpack.c.b16 %v737, %v734
    %v897 = vpack.c.b16 %v738, %v735
    %v898 = vpack.c.b16 %v742, %v739
    %v899 = vpack.c.b16 %v743, %v740
    %v900 = vpack.c.b16 %v744, %v741
    %v901 = vpack.c.b16 %v748, %v745
    %v902 = vpack.c.b16 %v749, %v746
    %v903 = vpack.c.b16 %v750, %v747
    %v904 = vpack.c.b16 %v754, %v751
    %v905 = vpack.c.b16 %v755, %v752
    %v906 = vpack.c.b16 %v756, %v753
    %v907 = vpack.c.b16 %v760, %v757
    %v908 = vpack.c.b16 %v761, %v758
    %v909 = vpack.c.b16 %v762, %v759
    %v910 = vpack.c.b16 %v766, %v763
    %v911 = vpack.c.b16 %v767, %v764
    %v912 = vpack.c.b16 %v768, %v765
    %1057 = vmatpush.bf16.msra.mxu0 %v790
    %1058 = vmatpush.bf16.msra.mxu0 %v787
    %1059 = vmatpush.bf16.msra.mxu0 %v784
    %1060 = vmatpush.bf16.msra.mxu0 %v781
    %1061 = vmatpush.bf16.msra.mxu0 %v778
    %1062 = vmatpush.bf16.msra.mxu0 %v775
    %1063 = vmatpush.bf16.msra.mxu0 %v772
    %1064 = vmatpush.bf16.msra.mxu0 %v769
    %1065 = vmatmul.bf16.gmra.mxu0 %v83
    %v1066 = vpop.f32.mrf.mxu0
    %v1067 = vadd.f32 %v283, %v1066
    %v1068 = vpop.f32.mrf.mxu0
    %1069 = vdwg.mxu0
    %1070 = vmatpush.bf16.msra.mxu0 %v814
    %1071 = vmatpush.bf16.msra.mxu0 %v811
    %1072 = vmatpush.bf16.msra.mxu0 %v808
    %1073 = vmatpush.bf16.msra.mxu0 %v805
    %1074 = vmatpush.bf16.msra.mxu0 %v802
    %1075 = vmatpush.bf16.msra.mxu0 %v799
    %1076 = vmatpush.bf16.msra.mxu0 %v796
    %1077 = vmatpush.bf16.msra.mxu0 %v793
    %1078 = vmatmul.bf16.gmra.mxu0 %v84
    %v1079 = vpop.f32.mrf.mxu0
    %v1080 = vadd.f32 %v1067, %v1079
    %v1081 = vpop.f32.mrf.mxu0
    %1082 = vdwg.mxu0
    %1083 = vmatpush.bf16.msra.mxu0 %v838
    %1084 = vmatpush.bf16.msra.mxu0 %v835
    %1085 = vmatpush.bf16.msra.mxu0 %v832
    %1086 = vmatpush.bf16.msra.mxu0 %v829
    %1087 = vmatpush.bf16.msra.mxu0 %v826
    %1088 = vmatpush.bf16.msra.mxu0 %v823
    %1089 = vmatpush.bf16.msra.mxu0 %v820
    %1090 = vmatpush.bf16.msra.mxu0 %v817
    %1091 = vmatmul.bf16.gmra.mxu0 %v85
    %v1092 = vpop.f32.mrf.mxu0
    %v1093 = vadd.f32 %v1080, %v1092
    %v1094 = vpop.f32.mrf.mxu0
    %1095 = vdwg.mxu0
    %1096 = vmatpush.bf16.msra.mxu0 %v862
    %1097 = vmatpush.bf16.msra.mxu0 %v859
    %1098 = vmatpush.bf16.msra.mxu0 %v856
    %1099 = vmatpush.bf16.msra.mxu0 %v853
    %1100 = vmatpush.bf16.msra.mxu0 %v850
    %1101 = vmatpush.bf16.msra.mxu0 %v847
    %1102 = vmatpush.bf16.msra.mxu0 %v844
    %1103 = vmatpush.bf16.msra.mxu0 %v841
    %1104 = vmatmul.bf16.gmra.mxu0 %v86
    %v1105 = vpop.f32.mrf.mxu0
    %v1106 = vadd.f32 %v1093, %v1105
    %v1107 = vpop.f32.mrf.mxu0
    %1108 = vdwg.mxu0
    %1109 = vmatpush.bf16.msra.mxu0 %v886
    %1110 = vmatpush.bf16.msra.mxu0 %v883
    %1111 = vmatpush.bf16.msra.mxu0 %v880
    %1112 = vmatpush.bf16.msra.mxu0 %v877
    %1113 = vmatpush.bf16.msra.mxu0 %v874
    %1114 = vmatpush.bf16.msra.mxu0 %v871
    %1115 = vmatpush.bf16.msra.mxu0 %v868
    %1116 = vmatpush.bf16.msra.mxu0 %v865
    %1117 = vmatmul.bf16.gmra.mxu0 %v87
    %v1118 = vpop.f32.mrf.mxu0
    %v1119 = vadd.f32 %v1106, %v1118
    %v1120 = vpop.f32.mrf.mxu0
    %1121 = vdwg.mxu0
    %1122 = vmatpush.bf16.msra.mxu0 %v910
    %1123 = vmatpush.bf16.msra.mxu0 %v907
    %1124 = vmatpush.bf16.msra.mxu0 %v904
    %1125 = vmatpush.bf16.msra.mxu0 %v901
    %1126 = vmatpush.bf16.msra.mxu0 %v898
    %1127 = vmatpush.bf16.msra.mxu0 %v895
    %1128 = vmatpush.bf16.msra.mxu0 %v892
    %1129 = vmatpush.bf16.msra.mxu0 %v889
    %1130 = vmatmul.bf16.gmra.mxu0 %v88
    %v1131 = vpop.f32.mrf.mxu0
    %v1132 = vadd.f32 %v1119, %v1131
    %v1133 = vpop.f32.mrf.mxu0
    %1134 = vdwg.mxu0
    %1135 = vmatpush.bf16.msra.mxu0 %v791
    %1136 = vmatpush.bf16.msra.mxu0 %v788
    %1137 = vmatpush.bf16.msra.mxu0 %v785
    %1138 = vmatpush.bf16.msra.mxu0 %v782
    %1139 = vmatpush.bf16.msra.mxu0 %v779
    %1140 = vmatpush.bf16.msra.mxu0 %v776
    %1141 = vmatpush.bf16.msra.mxu0 %v773
    %1142 = vmatpush.bf16.msra.mxu0 %v770
    %1143 = vmatmul.bf16.gmra.mxu0 %v83
    %v1144 = vpop.f32.mrf.mxu0
    %v1145 = vadd.f32 %v284, %v1144
    %v1146 = vpop.f32.mrf.mxu0
    %1147 = vdwg.mxu0
    %1148 = vmatpush.bf16.msra.mxu0 %v815
    %1149 = vmatpush.bf16.msra.mxu0 %v812
    %1150 = vmatpush.bf16.msra.mxu0 %v809
    %1151 = vmatpush.bf16.msra.mxu0 %v806
    %1152 = vmatpush.bf16.msra.mxu0 %v803
    %1153 = vmatpush.bf16.msra.mxu0 %v800
    %1154 = vmatpush.bf16.msra.mxu0 %v797
    %1155 = vmatpush.bf16.msra.mxu0 %v794
    %1156 = vmatmul.bf16.gmra.mxu0 %v84
    %v1157 = vpop.f32.mrf.mxu0
    %v1158 = vadd.f32 %v1145, %v1157
    %v1159 = vpop.f32.mrf.mxu0
    %1160 = vdwg.mxu0
    %1161 = vmatpush.bf16.msra.mxu0 %v839
    %1162 = vmatpush.bf16.msra.mxu0 %v836
    %1163 = vmatpush.bf16.msra.mxu0 %v833
    %1164 = vmatpush.bf16.msra.mxu0 %v830
    %1165 = vmatpush.bf16.msra.mxu0 %v827
    %1166 = vmatpush.bf16.msra.mxu0 %v824
    %1167 = vmatpush.bf16.msra.mxu0 %v821
    %1168 = vmatpush.bf16.msra.mxu0 %v818
    %1169 = vmatmul.bf16.gmra.mxu0 %v85
    %v1170 = vpop.f32.mrf.mxu0
    %v1171 = vadd.f32 %v1158, %v1170
    %v1172 = vpop.f32.mrf.mxu0
    %1173 = vdwg.mxu0
    %1174 = vmatpush.bf16.msra.mxu0 %v863
    %1175 = vmatpush.bf16.msra.mxu0 %v860
    %1176 = vmatpush.bf16.msra.mxu0 %v857
    %1177 = vmatpush.bf16.msra.mxu0 %v854
    %1178 = vmatpush.bf16.msra.mxu0 %v851
    %1179 = vmatpush.bf16.msra.mxu0 %v848
    %1180 = vmatpush.bf16.msra.mxu0 %v845
    %1181 = vmatpush.bf16.msra.mxu0 %v842
    %1182 = vmatmul.bf16.gmra.mxu0 %v86
    %v1183 = vpop.f32.mrf.mxu0
    %v1184 = vadd.f32 %v1171, %v1183
    %v1185 = vpop.f32.mrf.mxu0
    %1186 = vdwg.mxu0
    %1187 = vmatpush.bf16.msra.mxu0 %v887
    %1188 = vmatpush.bf16.msra.mxu0 %v884
    %1189 = vmatpush.bf16.msra.mxu0 %v881
    %1190 = vmatpush.bf16.msra.mxu0 %v878
    %1191 = vmatpush.bf16.msra.mxu0 %v875
    %1192 = vmatpush.bf16.msra.mxu0 %v872
    %1193 = vmatpush.bf16.msra.mxu0 %v869
    %1194 = vmatpush.bf16.msra.mxu0 %v866
    %1195 = vmatmul.bf16.gmra.mxu0 %v87
    %v1196 = vpop.f32.mrf.mxu0
    %v1197 = vadd.f32 %v1184, %v1196
    %v1198 = vpop.f32.mrf.mxu0
    %1199 = vdwg.mxu0
    %1200 = vmatpush.bf16.msra.mxu0 %v911
    %1201 = vmatpush.bf16.msra.mxu0 %v908
    %1202 = vmatpush.bf16.msra.mxu0 %v905
    %1203 = vmatpush.bf16.msra.mxu0 %v902
    %1204 = vmatpush.bf16.msra.mxu0 %v899
    %1205 = vmatpush.bf16.msra.mxu0 %v896
    %1206 = vmatpush.bf16.msra.mxu0 %v893
    %1207 = vmatpush.bf16.msra.mxu0 %v890
    %1208 = vmatmul.bf16.gmra.mxu0 %v88
    %v1209 = vpop.f32.mrf.mxu0
    %v1210 = vadd.f32 %v1197, %v1209
    %v1211 = vpop.f32.mrf.mxu0
    %1212 = vdwg.mxu0
    %1213 = vmatpush.bf16.msra.mxu0 %v792
    %1214 = vmatpush.bf16.msra.mxu0 %v789
    %1215 = vmatpush.bf16.msra.mxu0 %v786
    %1216 = vmatpush.bf16.msra.mxu0 %v783
    %1217 = vmatpush.bf16.msra.mxu0 %v780
    %1218 = vmatpush.bf16.msra.mxu0 %v777
    %1219 = vmatpush.bf16.msra.mxu0 %v774
    %1220 = vmatpush.bf16.msra.mxu0 %v771
    %1221 = vmatmul.bf16.gmra.mxu0 %v83
    %v1222 = vpop.f32.mrf.mxu0
    %v1223 = vadd.f32 %v285, %v1222
    %v1224 = vpop.f32.mrf.mxu0
    %v1225 = vadd.f32 %v285, %v1224
    %1226 = vdwg.mxu0
    %1227 = vmatpush.bf16.msra.mxu0 %v816
    %1228 = vmatpush.bf16.msra.mxu0 %v813
    %1229 = vmatpush.bf16.msra.mxu0 %v810
    %1230 = vmatpush.bf16.msra.mxu0 %v807
    %1231 = vmatpush.bf16.msra.mxu0 %v804
    %1232 = vmatpush.bf16.msra.mxu0 %v801
    %1233 = vmatpush.bf16.msra.mxu0 %v798
    %1234 = vmatpush.bf16.msra.mxu0 %v795
    %1235 = vmatmul.bf16.gmra.mxu0 %v84
    %v1236 = vpop.f32.mrf.mxu0
    %v1237 = vadd.f32 %v1223, %v1236
    %v1238 = vpop.f32.mrf.mxu0
    %v1239 = vadd.f32 %v1225, %v1238
    %1240 = vdwg.mxu0
    %1241 = vmatpush.bf16.msra.mxu0 %v840
    %1242 = vmatpush.bf16.msra.mxu0 %v837
    %1243 = vmatpush.bf16.msra.mxu0 %v834
    %1244 = vmatpush.bf16.msra.mxu0 %v831
    %1245 = vmatpush.bf16.msra.mxu0 %v828
    %1246 = vmatpush.bf16.msra.mxu0 %v825
    %1247 = vmatpush.bf16.msra.mxu0 %v822
    %1248 = vmatpush.bf16.msra.mxu0 %v819
    %1249 = vmatmul.bf16.gmra.mxu0 %v85
    %v1250 = vpop.f32.mrf.mxu0
    %v1251 = vadd.f32 %v1237, %v1250
    %v1252 = vpop.f32.mrf.mxu0
    %v1253 = vadd.f32 %v1239, %v1252
    %1254 = vdwg.mxu0
    %1255 = vmatpush.bf16.msra.mxu0 %v864
    %1256 = vmatpush.bf16.msra.mxu0 %v861
    %1257 = vmatpush.bf16.msra.mxu0 %v858
    %1258 = vmatpush.bf16.msra.mxu0 %v855
    %1259 = vmatpush.bf16.msra.mxu0 %v852
    %1260 = vmatpush.bf16.msra.mxu0 %v849
    %1261 = vmatpush.bf16.msra.mxu0 %v846
    %1262 = vmatpush.bf16.msra.mxu0 %v843
    %1263 = vmatmul.bf16.gmra.mxu0 %v86
    %v1264 = vpop.f32.mrf.mxu0
    %v1265 = vadd.f32 %v1251, %v1264
    %v1266 = vpop.f32.mrf.mxu0
    %v1267 = vadd.f32 %v1253, %v1266
    %1268 = vdwg.mxu0
    %1269 = vmatpush.bf16.msra.mxu0 %v888
    %1270 = vmatpush.bf16.msra.mxu0 %v885
    %1271 = vmatpush.bf16.msra.mxu0 %v882
    %1272 = vmatpush.bf16.msra.mxu0 %v879
    %1273 = vmatpush.bf16.msra.mxu0 %v876
    %1274 = vmatpush.bf16.msra.mxu0 %v873
    %1275 = vmatpush.bf16.msra.mxu0 %v870
    %1276 = vmatpush.bf16.msra.mxu0 %v867
    %1277 = vmatmul.bf16.gmra.mxu0 %v87
    %v1278 = vpop.f32.mrf.mxu0
    %v1279 = vadd.f32 %v1265, %v1278
    %v1280 = vpop.f32.mrf.mxu0
    %v1281 = vadd.f32 %v1267, %v1280
    %1282 = vdwg.mxu0
    %1283 = vmatpush.bf16.msra.mxu0 %v912
    %1284 = vmatpush.bf16.msra.mxu0 %v909
    %1285 = vmatpush.bf16.msra.mxu0 %v906
    %1286 = vmatpush.bf16.msra.mxu0 %v903
    %1287 = vmatpush.bf16.msra.mxu0 %v900
    %1288 = vmatpush.bf16.msra.mxu0 %v897
    %1289 = vmatpush.bf16.msra.mxu0 %v894
    %1290 = vmatpush.bf16.msra.mxu0 %v891
    %1291 = vmatmul.bf16.gmra.mxu0 %v88
    %v1292 = vpop.f32.mrf.mxu0
    %v1293 = vadd.f32 %v1279, %v1292
    %v1294 = vpop.f32.mrf.mxu0
    %v1295 = vadd.f32 %v1281, %v1294
    %1296 = vdwg.mxu0
    %v1297 = vld [vmem:[%s3] sm:$0x7]
    %v1298 = vadd.f32 %v1132, %v1297
    %v1299 = vxor.u32 %v1298, 2147483648
    %v1300 = vmul.f32 %v1299, 1.442695
    %v1301 = vpow.pop %v1300
    %v1302 = vadd.f32 %v1301, 1.0
    %v1303 = vrcp.pop %v1302
    %v1304 = vmul.f32 %v1302, %v1303
    %v1305 = vsub.f32 1.0, %v1304
    %v1306 = vmul.f32 %v1303, %v1305
    %v1307 = vadd.f32 %v1303, %v1306
    %vm1308 = vweird.f32 %v1302
    %vm1309 = vweird.f32 %v1303
    %vm1310 = vmor %vm1308, %vm1309
    %v1311 = vsel %vm1310, %v1303, %v1307
    %v1312 = vand.u32 2147483647, %v1302
    %vm1313 = vcmp.eq.f32.partialorder %v1312, 8.507059e+37
    %v1314 = vand.u32 %v1302, 2147483648
    %v1315 = vor.u32 1.1754944e-38, %v1314
    %v1316 = vsel %vm1313, %v1315, %v1311
    %v1317 = vmul.f32 1.0, %v1316
    %v1319 = vperm.slane %v1297, 0
    %1320 = vrot.lane.b32.xlu0 %v1319, 64
    %v1321 = vpop.permute.xlu0 %1320
    %v1323 = vmul.f32 %v1317, %v1321
    %1325 = vrot.lane.b32.xlu0 %v1323, 64
    %v1326 = vpop.permute.xlu0 %1325
    %v1328 = vadd.f32 %v1132, %v1326
    %v1329 = vtanh.pop %v1328
    %v1330 = vsub.f32 1.0, %v1317
    %1332 = vrot.lane.b32.xlu0 %v1329, 96
    %v1333 = vpop.permute.xlu0 %1332
    %v1335 = vmul.f32 %v1330, %v1333
    %v1337 = vadd.f32 %v1132, %v1319
    %v1338 = vxor.u32 %v1337, 2147483648
    %v1339 = vmul.f32 %v1338, 1.442695
    %v1340 = vpow.pop %v1339
    %v1341 = vadd.f32 %v1340, 1.0
    %v1342 = vrcp.pop %v1341
    %v1343 = vmul.f32 %v1341, %v1342
    %v1344 = vsub.f32 1.0, %v1343
    %v1345 = vmul.f32 %v1342, %v1344
    %v1346 = vadd.f32 %v1342, %v1345
    %vm1347 = vweird.f32 %v1341
    %vm1348 = vweird.f32 %v1342
    %vm1349 = vmor %vm1347, %vm1348
    %v1350 = vsel %vm1349, %v1342, %v1346
    %v1351 = vand.u32 2147483647, %v1341
    %vm1352 = vcmp.eq.f32.partialorder %v1351, 8.507059e+37
    %v1353 = vand.u32 %v1341, 2147483648
    %v1354 = vor.u32 1.1754944e-38, %v1353
    %v1355 = vsel %vm1352, %v1354, %v1350
    %v1356 = vmul.f32 1.0, %v1355
    %v1357 = vperm.slane %v1297, 1
    %v1359 = vadd.f32 %v1210, %v1357
    %v1360 = vxor.u32 %v1359, 2147483648
    %v1361 = vmul.f32 %v1360, 1.442695
    %v1362 = vpow.pop %v1361
    %v1363 = vadd.f32 %v1362, 1.0
    %v1364 = vrcp.pop %v1363
    %v1365 = vmul.f32 %v1363, %v1364
    %v1366 = vsub.f32 1.0, %v1365
    %v1367 = vmul.f32 %v1364, %v1366
    %v1368 = vadd.f32 %v1364, %v1367
    %vm1369 = vweird.f32 %v1363
    %vm1370 = vweird.f32 %v1364
    %vm1371 = vmor %vm1369, %vm1370
    %v1372 = vsel %vm1371, %v1364, %v1368
    %v1373 = vand.u32 2147483647, %v1363
    %vm1374 = vcmp.eq.f32.partialorder %v1373, 8.507059e+37
    %v1375 = vand.u32 %v1363, 2147483648
    %v1376 = vor.u32 1.1754944e-38, %v1375
    %v1377 = vsel %vm1374, %v1376, %v1372
    %v1378 = vmul.f32 1.0, %v1377
    %1379 = vrot.lane.b32.xlu0 %v1357, 64
    %v1380 = vpop.permute.xlu0 %1379
    %v1382 = vmul.f32 %v1356, %v1380
    %1384 = vrot.lane.b32.xlu0 %v1382, 64
    %v1385 = vpop.permute.xlu0 %1384
    %v1387 = vadd.f32 %v1210, %v1385
    %v1388 = vtanh.pop %v1387
    %v1389 = vsub.f32 1.0, %v1378
    %1391 = vrot.lane.b32.xlu0 %v1388, 96
    %v1392 = vpop.permute.xlu0 %1391
    %v1394 = vmul.f32 %v1389, %v1392
    %v1395 = vperm.slane %v1297, 2
    %1396 = vrot.lane.b32.xlu0 %v1395, 64
    %v1397 = vpop.permute.xlu0 %1396
    %v1399 = vmul.f32 %v1378, %v1397
    %1401 = vrot.lane.b32.xlu0 %v1399, 64
    %v1402 = vpop.permute.xlu0 %1401
    %v1404 = vadd.f32 %v1293, %v1402
    %v1405 = vtanh.pop %v1404
    %1407 = vrot.lane.b32.xlu0 %v1405, 96
    %v1408 = vpop.permute.xlu0 %1407
    %v1410 = vmul.f32 %v1389, %v1408
    %v1411 = vld [vmem:[%s4] sm:$0xff]
    %v1412 = vld [vmem:[%s4 + $0x8] sm:$0xff]
    %v1413 = vld [vmem:[%s4 + $0x10] sm:$0xff]
    %v1414 = vld [vmem:[%s4 + $0x18] sm:$0xff]
    %v1416 = vadd.f32 %v1293, %v1395
    %v1417 = vxor.u32 %v1416, 2147483648
    %v1418 = vmul.f32 %v1417, 1.442695
    %v1419 = vpow.pop %v1418
    %v1420 = vadd.f32 %v1419, 1.0
    %v1421 = vrcp.pop %v1420
    %v1422 = vmul.f32 %v1420, %v1421
    %v1423 = vsub.f32 1.0, %v1422
    %v1424 = vmul.f32 %v1421, %v1423
    %v1425 = vadd.f32 %v1421, %v1424
    %vm1426 = vweird.f32 %v1420
    %vm1427 = vweird.f32 %v1421
    %vm1428 = vmor %vm1426, %vm1427
    %v1429 = vsel %vm1428, %v1421, %v1425
    %v1430 = vand.u32 2147483647, %v1420
    %vm1431 = vcmp.eq.f32.partialorder %v1430, 8.507059e+37
    %v1432 = vand.u32 %v1420, 2147483648
    %v1433 = vor.u32 1.1754944e-38, %v1432
    %v1434 = vsel %vm1431, %v1433, %v1429
    %v1435 = vmul.f32 1.0, %v1434
    %v1436 = vmul.f32 %v1435, %v1397
    %1438 = vrot.lane.b32.xlu0 %v1436, 64
    %v1439 = vpop.permute.xlu0 %1438
    %v1441 = vadd.f32 %v1293, %v1439
    %v1442 = vtanh.pop %v1441
    %v1443 = vsub.f32 1.0, %v1435
    %1445 = vrot.lane.b32.xlu0 %v1442, 96
    %v1446 = vpop.permute.xlu0 %1445
    %v1448 = vmul.f32 %v1443, %v1446
    %1450 = vrot.lane.b32.xlu0 %v1448, 64
    %v1451 = vpop.permute.xlu0 %1450
    %vm1453 = vcmask 257027
    %1454 = vst.msk [vmem:[#allocation2 - $0x3] sm:$0x8] %vm1453, %v1451
    %v1455 = vrot.slane %v1448, 3
    %1456 = vrot.lane.b32.xlu0 %v1455, 64
    %v1457 = vpop.permute.xlu0 %1456
    %1458 = vrot.lane.b32.xlu0 %v1395, 96
    %v1459 = vpop.permute.xlu0 %1458
    %vm1461 = vcmask 261120
    %v1462 = vsel %vm1461, %v1457, 0
    %1464 = vmatpush.msra.mxu0 0.0
    %1465 = vmatpush.msra.mxu0 0.0
    %1466 = vmatpush.msra.mxu0 0.0
    %1467 = vmatpush.msra.mxu0 0.0
    %1468 = vmatpush.msra.mxu0 0.0
    %1469 = vmatpush.msra.mxu0 0.0
    %1470 = vmatpush.msra.mxu0 0.0
    %1471 = vmatpush.msra.mxu0 0.0
    %1472 = vmatpush.msra.mxu0 0.0
    %1473 = vmatpush.msra.mxu0 0.0
    %1474 = vmatpush.msra.mxu0 0.0
    %1475 = vmatpush.msra.mxu0 0.0
    %1476 = vmatpush.msra.mxu0 %v1414
    %1477 = vmatpush.msra.mxu0 %v1413
    %1478 = vmatpush.msra.mxu0 %v1412
    %1479 = vmatpush.msra.mxu0 %v1411
    %1480 = vmatmul.f32.gmra.mxu0 %v1462
    %v1481 = vpop.f32.mrf.mxu0
    %v1482 = vadd.f32 %v1459, %v1481
    %1483 = vdwg.mxu0
    %v1485 = vrot.slane %v1482, 4
    %1486 = vrot.lane.b32.xlu0 %v1485, 32
    %v1487 = vpop.permute.xlu0 %1486
    %v1489 = vadd.f32 %v1293, %v1487
    %v1490 = vxor.u32 %v1489, 2147483648
    %v1491 = vmul.f32 %v1490, 1.442695
    %v1492 = vpow.pop %v1491
    %v1493 = vadd.f32 %v1492, 1.0
    %v1494 = vrcp.pop %v1493
    %v1495 = vmul.f32 %v1493, %v1494
    %v1496 = vsub.f32 1.0, %v1495
    %v1497 = vmul.f32 %v1494, %v1496
    %v1498 = vadd.f32 %v1494, %v1497
    %vm1499 = vweird.f32 %v1493
    %vm1500 = vweird.f32 %v1494
    %vm1501 = vmor %vm1499, %vm1500
    %v1502 = vsel %vm1501, %v1494, %v1498
    %v1503 = vand.u32 2147483647, %v1493
    %vm1504 = vcmp.eq.f32.partialorder %v1503, 8.507059e+37
    %v1505 = vand.u32 %v1493, 2147483648
    %v1506 = vor.u32 1.1754944e-38, %v1505
    %v1507 = vsel %vm1504, %v1506, %v1502
    %v1508 = vmul.f32 1.0, %v1507
    %1509 = vrot.lane.b32.xlu0 %v1485, 96
    %v1510 = vpop.permute.xlu0 %1509
    %v1512 = vmul.f32 %v1508, %v1510
    %1514 = vrot.lane.b32.xlu0 %v1512, 64
    %v1515 = vpop.permute.xlu0 %1514
    %v1517 = vadd.f32 %v1293, %v1515
    %v1518 = vtanh.pop %v1517
    %v1519 = vsub.f32 1.0, %v1508
    %1521 = vrot.lane.b32.xlu0 %v1518, 96
    %v1522 = vpop.permute.xlu0 %1521
    %v1524 = vmul.f32 %v1519, %v1522
    %v1525 = vrot.slane %v1448, 7
    %v1527 = vmul.f32 %v1508, %v1525
    %v1528 = vadd.f32 %v1524, %v1527
    %1530 = vrot.lane.b32.xlu0 %v1528, 64
    %v1531 = vpop.permute.xlu0 %1530
    %vm1533 = vcmask 258052
    %1534 = vst.msk [vmem:[#allocation2 - $0x3] sm:$0x10] %vm1533, %v1531
    %v1535 = vrot.slane %v1528, 4
    %1536 = vrot.lane.b32.xlu0 %v1535, 64
    %v1537 = vpop.permute.xlu0 %1536
    %v1538 = vsel %vm1461, %v1537, 0
    %1540 = vmatpush.msra.mxu0 0.0
    %1541 = vmatpush.msra.mxu0 0.0
    %1542 = vmatpush.msra.mxu0 0.0
    %1543 = vmatpush.msra.mxu0 0.0
    %1544 = vmatpush.msra.mxu0 0.0
    %1545 = vmatpush.msra.mxu0 0.0
    %1546 = vmatpush.msra.mxu0 0.0
    %1547 = vmatpush.msra.mxu0 0.0
    %1548 = vmatpush.msra.mxu0 0.0
    %1549 = vmatpush.msra.mxu0 0.0
    %1550 = vmatpush.msra.mxu0 0.0
    %1551 = vmatpush.msra.mxu0 0.0
    %1552 = vmatpush.msra.mxu0 %v1414
    %1553 = vmatpush.msra.mxu0 %v1413
    %1554 = vmatpush.msra.mxu0 %v1412
    %1555 = vmatpush.msra.mxu0 %v1411
    %1556 = vmatmul.f32.gmra.mxu0 %v1538
    %v1557 = vpop.f32.mrf.mxu0
    %v1558 = vadd.f32 %v1459, %v1557
    %1559 = vdwg.mxu0
    %v1561 = vrot.slane %v1558, 3
    %1562 = vrot.lane.b32.xlu0 %v1561, 32
    %v1563 = vpop.permute.xlu0 %1562
    %v1565 = vadd.f32 %v1293, %v1563
    %v1566 = vxor.u32 %v1565, 2147483648
    %v1567 = vmul.f32 %v1566, 1.442695
    %v1568 = vpow.pop %v1567
    %v1569 = vadd.f32 %v1568, 1.0
    %v1570 = vrcp.pop %v1569
    %v1571 = vmul.f32 %v1569, %v1570
    %v1572 = vsub.f32 1.0, %v1571
    %v1573 = vmul.f32 %v1570, %v1572
    %v1574 = vadd.f32 %v1570, %v1573
    %vm1575 = vweird.f32 %v1569
    %vm1576 = vweird.f32 %v1570
    %vm1577 = vmor %vm1575, %vm1576
    %v1578 = vsel %vm1577, %v1570, %v1574
    %v1579 = vand.u32 2147483647, %v1569
    %vm1580 = vcmp.eq.f32.partialorder %v1579, 8.507059e+37
    %v1581 = vand.u32 %v1569, 2147483648
    %v1582 = vor.u32 1.1754944e-38, %v1581
    %v1583 = vsel %vm1580, %v1582, %v1578
    %v1584 = vmul.f32 1.0, %v1583
    %1585 = vrot.lane.b32.xlu0 %v1561, 96
    %v1586 = vpop.permute.xlu0 %1585
    %v1588 = vmul.f32 %v1584, %v1586
    %1590 = vrot.lane.b32.xlu0 %v1588, 64
    %v1591 = vpop.permute.xlu0 %1590
    %v1593 = vadd.f32 %v1293, %v1591
    %v1594 = vtanh.pop %v1593
    %v1595 = vsub.f32 1.0, %v1584
    %1597 = vrot.lane.b32.xlu0 %v1594, 96
    %v1598 = vpop.permute.xlu0 %1597
    %v1600 = vmul.f32 %v1595, %v1598
    %v1601 = vrot.slane %v1528, 7
    %v1603 = vmul.f32 %v1584, %v1601
    %v1604 = vadd.f32 %v1600, %v1603
    %1606 = vrot.lane.b32.xlu0 %v1604, 64
    %v1607 = vpop.permute.xlu0 %1606
    %vm1609 = vcmask 259077
    %1610 = vst.msk [vmem:[#allocation2 - $0x3] sm:$0x20] %vm1609, %v1607
    %v1611 = vrot.slane %v1604, 5
    %1612 = vrot.lane.b32.xlu0 %v1611, 64
    %v1613 = vpop.permute.xlu0 %1612
    %v1614 = vsel %vm1461, %v1613, 0
    %1616 = vmatpush.msra.mxu0 0.0
    %1617 = vmatpush.msra.mxu0 0.0
    %1618 = vmatpush.msra.mxu0 0.0
    %1619 = vmatpush.msra.mxu0 0.0
    %1620 = vmatpush.msra.mxu0 0.0
    %1621 = vmatpush.msra.mxu0 0.0
    %1622 = vmatpush.msra.mxu0 0.0
    %1623 = vmatpush.msra.mxu0 0.0
    %1624 = vmatpush.msra.mxu0 0.0
    %1625 = vmatpush.msra.mxu0 0.0
    %1626 = vmatpush.msra.mxu0 0.0
    %1627 = vmatpush.msra.mxu0 0.0
    %1628 = vmatpush.msra.mxu0 %v1414
    %1629 = vmatpush.msra.mxu0 %v1413
    %1630 = vmatpush.msra.mxu0 %v1412
    %1631 = vmatpush.msra.mxu0 %v1411
    %1632 = vmatmul.f32.gmra.mxu0 %v1614
    %v1633 = vpop.f32.mrf.mxu0
    %v1634 = vadd.f32 %v1459, %v1633
    %1635 = vdwg.mxu0
    %v1637 = vrot.slane %v1634, 2
    %1638 = vrot.lane.b32.xlu0 %v1637, 32
    %v1639 = vpop.permute.xlu0 %1638
    %v1641 = vadd.f32 %v1293, %v1639
    %v1642 = vxor.u32 %v1641, 2147483648
    %v1643 = vmul.f32 %v1642, 1.442695
    %v1644 = vpow.pop %v1643
    %v1645 = vadd.f32 %v1644, 1.0
    %v1646 = vrcp.pop %v1645
    %v1647 = vmul.f32 %v1645, %v1646
    %v1648 = vsub.f32 1.0, %v1647
    %v1649 = vmul.f32 %v1646, %v1648
    %v1650 = vadd.f32 %v1646, %v1649
    %vm1651 = vweird.f32 %v1645
    %vm1652 = vweird.f32 %v1646
    %vm1653 = vmor %vm1651, %vm1652
    %v1654 = vsel %vm1653, %v1646, %v1650
    %v1655 = vand.u32 2147483647, %v1645
    %vm1656 = vcmp.eq.f32.partialorder %v1655, 8.507059e+37
    %v1657 = vand.u32 %v1645, 2147483648
    %v1658 = vor.u32 1.1754944e-38, %v1657
    %v1659 = vsel %vm1656, %v1658, %v1654
    %v1660 = vmul.f32 1.0, %v1659
    %1661 = vrot.lane.b32.xlu0 %v1637, 96
    %v1662 = vpop.permute.xlu0 %1661
    %v1664 = vmul.f32 %v1660, %v1662
    %1666 = vrot.lane.b32.xlu0 %v1664, 64
    %v1667 = vpop.permute.xlu0 %1666
    %v1669 = vadd.f32 %v1293, %v1667
    %v1670 = vtanh.pop %v1669
    %v1671 = vsub.f32 1.0, %v1660
    %1673 = vrot.lane.b32.xlu0 %v1670, 96
    %v1674 = vpop.permute.xlu0 %1673
    %v1676 = vmul.f32 %v1671, %v1674
    %v1677 = vrot.slane %v1604, 7
    %v1679 = vmul.f32 %v1660, %v1677
    %v1680 = vadd.f32 %v1676, %v1679
    %1682 = vrot.lane.b32.xlu0 %v1680, 64
    %v1683 = vpop.permute.xlu0 %1682
    %vm1685 = vcmask 260102
    %1686 = vst.msk [vmem:[#allocation2 - $0x3] sm:$0x40] %vm1685, %v1683
    %v1687 = vrot.slane %v1680, 6
    %1688 = vrot.lane.b32.xlu0 %v1687, 64
    %v1689 = vpop.permute.xlu0 %1688
    %v1690 = vsel %vm1461, %v1689, 0
    %1692 = vmatpush.msra.mxu0 0.0
    %1693 = vmatpush.msra.mxu0 0.0
    %1694 = vmatpush.msra.mxu0 0.0
    %1695 = vmatpush.msra.mxu0 0.0
    %1696 = vmatpush.msra.mxu0 0.0
    %1697 = vmatpush.msra.mxu0 0.0
    %1698 = vmatpush.msra.mxu0 0.0
    %1699 = vmatpush.msra.mxu0 0.0
    %1700 = vmatpush.msra.mxu0 0.0
    %1701 = vmatpush.msra.mxu0 0.0
    %1702 = vmatpush.msra.mxu0 0.0
    %1703 = vmatpush.msra.mxu0 0.0
    %1704 = vmatpush.msra.mxu0 %v1414
    %1705 = vmatpush.msra.mxu0 %v1413
    %1706 = vmatpush.msra.mxu0 %v1412
    %1707 = vmatpush.msra.mxu0 %v1411
    %1708 = vmatmul.f32.gmra.mxu0 %v1690
    %v1709 = vpop.f32.mrf.mxu0
    %v1710 = vadd.f32 %v1459, %v1709
    %1711 = vdwg.mxu0
    %v1713 = vrot.slane %v1710, 1
    %1714 = vrot.lane.b32.xlu0 %v1713, 32
    %v1715 = vpop.permute.xlu0 %1714
    %v1717 = vadd.f32 %v1293, %v1715
    %v1718 = vxor.u32 %v1717, 2147483648
    %v1719 = vmul.f32 %v1718, 1.442695
    %v1720 = vpow.pop %v1719
    %v1721 = vadd.f32 %v1720, 1.0
    %v1722 = vrcp.pop %v1721
    %v1723 = vmul.f32 %v1721, %v1722
    %v1724 = vsub.f32 1.0, %v1723
    %v1725 = vmul.f32 %v1722, %v1724
    %v1726 = vadd.f32 %v1722, %v1725
    %vm1727 = vweird.f32 %v1721
    %vm1728 = vweird.f32 %v1722
    %vm1729 = vmor %vm1727, %vm1728
    %v1730 = vsel %vm1729, %v1722, %v1726
    %v1731 = vand.u32 2147483647, %v1721
    %vm1732 = vcmp.eq.f32.partialorder %v1731, 8.507059e+37
    %v1733 = vand.u32 %v1721, 2147483648
    %v1734 = vor.u32 1.1754944e-38, %v1733
    %v1735 = vsel %vm1732, %v1734, %v1730
    %v1736 = vmul.f32 1.0, %v1735
    %1737 = vrot.lane.b32.xlu0 %v1713, 96
    %v1738 = vpop.permute.xlu0 %1737
    %v1740 = vmul.f32 %v1736, %v1738
    %1742 = vrot.lane.b32.xlu0 %v1740, 64
    %v1743 = vpop.permute.xlu0 %1742
    %v1745 = vadd.f32 %v1293, %v1743
    %v1746 = vtanh.pop %v1745
    %v1747 = vsub.f32 1.0, %v1736
    %1749 = vrot.lane.b32.xlu0 %v1746, 96
    %v1750 = vpop.permute.xlu0 %1749
    %v1752 = vmul.f32 %v1747, %v1750
    %v1753 = vrot.slane %v1680, 7
    %v1755 = vmul.f32 %v1736, %v1753
    %v1756 = vadd.f32 %v1752, %v1755
    %1758 = vrot.lane.b32.xlu0 %v1756, 64
    %v1759 = vpop.permute.xlu0 %1758
    %vm1761 = vcmask 261127
    %1762 = vst.msk [vmem:[#allocation2 - $0x3] sm:$0x80] %vm1761, %v1759
    %v1763 = vrot.slane %v1756, 7
    %1764 = vrot.lane.b32.xlu0 %v1763, 64
    %v1765 = vpop.permute.xlu0 %1764
    %v1766 = vsel %vm1461, %v1765, 0
    %1768 = vmatpush.msra.mxu0 0.0
    %1769 = vmatpush.msra.mxu0 0.0
    %1770 = vmatpush.msra.mxu0 0.0
    %1771 = vmatpush.msra.mxu0 0.0
    %1772 = vmatpush.msra.mxu0 0.0
    %1773 = vmatpush.msra.mxu0 0.0
    %1774 = vmatpush.msra.mxu0 0.0
    %1775 = vmatpush.msra.mxu0 0.0
    %1776 = vmatpush.msra.mxu0 0.0
    %1777 = vmatpush.msra.mxu0 0.0
    %1778 = vmatpush.msra.mxu0 0.0
    %1779 = vmatpush.msra.mxu0 0.0
    %1780 = vmatpush.msra.mxu0 %v1414
    %1781 = vmatpush.msra.mxu0 %v1413
    %1782 = vmatpush.msra.mxu0 %v1412
    %1783 = vmatpush.msra.mxu0 %v1411
    %1784 = vmatmul.f32.gmra.mxu0 %v1766
    %v1785 = vpop.f32.mrf.mxu0
    %v1786 = vadd.f32 %v1459, %v1785
    %1787 = vdwg.mxu0
    %1789 = vrot.lane.b32.xlu0 %v1786, 32
    %v1790 = vpop.permute.xlu0 %1789
    %v1792 = vadd.f32 %v1295, %v1790
    %v1793 = vxor.u32 %v1792, 2147483648
    %v1794 = vmul.f32 %v1793, 1.442695
    %v1795 = vpow.pop %v1794
    %v1796 = vadd.f32 %v1795, 1.0
    %v1797 = vrcp.pop %v1796
    %v1798 = vmul.f32 %v1796, %v1797
    %v1799 = vsub.f32 1.0, %v1798
    %v1800 = vmul.f32 %v1797, %v1799
    %v1801 = vadd.f32 %v1797, %v1800
    %vm1802 = vweird.f32 %v1796
    %vm1803 = vweird.f32 %v1797
    %vm1804 = vmor %vm1802, %vm1803
    %v1805 = vsel %vm1804, %v1797, %v1801
    %v1806 = vand.u32 2147483647, %v1796
    %vm1807 = vcmp.eq.f32.partialorder %v1806, 8.507059e+37
    %v1808 = vand.u32 %v1796, 2147483648
    %v1809 = vor.u32 1.1754944e-38, %v1808
    %v1810 = vsel %vm1807, %v1809, %v1805
    %v1811 = vmul.f32 1.0, %v1810
    %1812 = vrot.lane.b32.xlu0 %v1786, 96
    %v1813 = vpop.permute.xlu0 %1812
    %v1815 = vmul.f32 %v1811, %v1813
    %1817 = vrot.lane.b32.xlu0 %v1815, 64
    %v1818 = vpop.permute.xlu0 %1817
    %v1820 = vadd.f32 %v1295, %v1818
    %v1821 = vtanh.pop %v1820
    %v1822 = vsub.f32 1.0, %v1811
    %1824 = vrot.lane.b32.xlu0 %v1821, 96
    %v1825 = vpop.permute.xlu0 %1824
    %v1827 = vmul.f32 %v1822, %v1825
    %v1829 = vmul.f32 %v1811, %v1763
    %v1830 = vadd.f32 %v1827, %v1829
    %1832 = vrot.lane.b32.xlu0 %v1830, 64
    %v1833 = vpop.permute.xlu0 %1832
    %vm1835 = vcmask 253952
    %1836 = vst.msk [vmem:[#allocation2 + $0x5] sm:$0x1] %vm1835, %v1833
    %v1837 = vsel %vm1461, %v1833, 0
    %1839 = vmatpush.msra.mxu0 0.0
    %1840 = vmatpush.msra.mxu0 0.0
    %1841 = vmatpush.msra.mxu0 0.0
    %1842 = vmatpush.msra.mxu0 0.0
    %1843 = vmatpush.msra.mxu0 0.0
    %1844 = vmatpush.msra.mxu0 0.0
    %1845 = vmatpush.msra.mxu0 0.0
    %1846 = vmatpush.msra.mxu0 0.0
    %1847 = vmatpush.msra.mxu0 0.0
    %1848 = vmatpush.msra.mxu0 0.0
    %1849 = vmatpush.msra.mxu0 0.0
    %1850 = vmatpush.msra.mxu0 0.0
    %1851 = vmatpush.msra.mxu0 %v1414
    %1852 = vmatpush.msra.mxu0 %v1413
    %1853 = vmatpush.msra.mxu0 %v1412
    %1854 = vmatpush.msra.mxu0 %v1411
    %1855 = vmatmul.f32.gmra.mxu0 %v1837
    %v1856 = vpop.f32.mrf.mxu0
    %v1857 = vadd.f32 %v1459, %v1856
    %1858 = vdwg.mxu0
    %v1860 = vrot.slane %v1857, 7
    %1861 = vrot.lane.b32.xlu0 %v1860, 32
    %v1862 = vpop.permute.xlu0 %1861
    %v1864 = vadd.f32 %v1295, %v1862
    %v1865 = vxor.u32 %v1864, 2147483648
    %v1866 = vmul.f32 %v1865, 1.442695
    %v1867 = vpow.pop %v1866
    %v1868 = vadd.f32 %v1867, 1.0
    %v1869 = vrcp.pop %v1868
    %v1870 = vmul.f32 %v1868, %v1869
    %v1871 = vsub.f32 1.0, %v1870
    %v1872 = vmul.f32 %v1869, %v1871
    %v1873 = vadd.f32 %v1869, %v1872
    %vm1874 = vweird.f32 %v1868
    %vm1875 = vweird.f32 %v1869
    %vm1876 = vmor %vm1874, %vm1875
    %v1877 = vsel %vm1876, %v1869, %v1873
    %v1878 = vand.u32 2147483647, %v1868
    %vm1879 = vcmp.eq.f32.partialorder %v1878, 8.507059e+37
    %v1880 = vand.u32 %v1868, 2147483648
    %v1881 = vor.u32 1.1754944e-38, %v1880
    %v1882 = vsel %vm1879, %v1881, %v1877
    %v1883 = vmul.f32 1.0, %v1882
    %1884 = vrot.lane.b32.xlu0 %v1860, 96
    %v1885 = vpop.permute.xlu0 %1884
    %v1887 = vmul.f32 %v1883, %v1885
    %1889 = vrot.lane.b32.xlu0 %v1887, 64
    %v1890 = vpop.permute.xlu0 %1889
    %v1892 = vadd.f32 %v1295, %v1890
    %v1893 = vtanh.pop %v1892
    %v1894 = vsub.f32 1.0, %v1883
    %1896 = vrot.lane.b32.xlu0 %v1893, 96
    %v1897 = vpop.permute.xlu0 %1896
    %v1899 = vmul.f32 %v1894, %v1897
    %v1900 = vrot.slane %v1830, 7
    %v1902 = vmul.f32 %v1883, %v1900
    %v1903 = vadd.f32 %v1899, %v1902
    %1905 = vrot.lane.b32.xlu0 %v1903, 64
    %v1906 = vpop.permute.xlu0 %1905
    %vm1908 = vcmask 254977
    %1909 = vst.msk [vmem:[#allocation2 + $0x5] sm:$0x2] %vm1908, %v1906
    %v1910 = vrot.slane %v1903, 1
    %1911 = vrot.lane.b32.xlu0 %v1910, 64
    %v1912 = vpop.permute.xlu0 %1911
    %v1913 = vsel %vm1461, %v1912, 0
    %1915 = vmatpush.msra.mxu0 0.0
    %1916 = vmatpush.msra.mxu0 0.0
    %1917 = vmatpush.msra.mxu0 0.0
    %1918 = vmatpush.msra.mxu0 0.0
    %1919 = vmatpush.msra.mxu0 0.0
    %1920 = vmatpush.msra.mxu0 0.0
    %1921 = vmatpush.msra.mxu0 0.0
    %1922 = vmatpush.msra.mxu0 0.0
    %1923 = vmatpush.msra.mxu0 0.0
    %1924 = vmatpush.msra.mxu0 0.0
    %1925 = vmatpush.msra.mxu0 0.0
    %1926 = vmatpush.msra.mxu0 0.0
    %1927 = vmatpush.msra.mxu0 %v1414
    %1928 = vmatpush.msra.mxu0 %v1413
    %1929 = vmatpush.msra.mxu0 %v1412
    %1930 = vmatpush.msra.mxu0 %v1411
    %1931 = vmatmul.f32.gmra.mxu0 %v1913
    %v1932 = vpop.f32.mrf.mxu0
    %v1933 = vadd.f32 %v1459, %v1932
    %1934 = vdwg.mxu0
    %v1936 = vrot.slane %v1933, 6
    %1937 = vrot.lane.b32.xlu0 %v1936, 32
    %v1938 = vpop.permute.xlu0 %1937
    %v1940 = vadd.f32 %v1295, %v1938
    %v1941 = vxor.u32 %v1940, 2147483648
    %v1942 = vmul.f32 %v1941, 1.442695
    %v1943 = vpow.pop %v1942
    %v1944 = vadd.f32 %v1943, 1.0
    %v1945 = vrcp.pop %v1944
    %v1946 = vmul.f32 %v1944, %v1945
    %v1947 = vsub.f32 1.0, %v1946
    %v1948 = vmul.f32 %v1945, %v1947
    %v1949 = vadd.f32 %v1945, %v1948
    %vm1950 = vweird.f32 %v1944
    %vm1951 = vweird.f32 %v1945
    %vm1952 = vmor %vm1950, %vm1951
    %v1953 = vsel %vm1952, %v1945, %v1949
    %v1954 = vand.u32 2147483647, %v1944
    %vm1955 = vcmp.eq.f32.partialorder %v1954, 8.507059e+37
    %v1956 = vand.u32 %v1944, 2147483648
    %v1957 = vor.u32 1.1754944e-38, %v1956
    %v1958 = vsel %vm1955, %v1957, %v1953
    %v1959 = vmul.f32 1.0, %v1958
    %1960 = vrot.lane.b32.xlu0 %v1936, 96
    %v1961 = vpop.permute.xlu0 %1960
    %v1963 = vmul.f32 %v1959, %v1961
    %1965 = vrot.lane.b32.xlu0 %v1963, 64
    %v1966 = vpop.permute.xlu0 %1965
    %v1968 = vadd.f32 %v1295, %v1966
    %v1969 = vtanh.pop %v1968
    %v1970 = vsub.f32 1.0, %v1959
    %1972 = vrot.lane.b32.xlu0 %v1969, 96
    %v1973 = vpop.permute.xlu0 %1972
    %v1975 = vmul.f32 %v1970, %v1973
    %v1976 = vrot.slane %v1903, 7
    %v1978 = vmul.f32 %v1959, %v1976
    %v1979 = vadd.f32 %v1975, %v1978
    %1981 = vrot.lane.b32.xlu0 %v1979, 64
    %v1982 = vpop.permute.xlu0 %1981
    %vm1984 = vcmask 256002
    %1985 = vst.msk [vmem:[#allocation2 + $0x5] sm:$0x4] %vm1984, %v1982
    %v1986 = vld [vmem:[#allocation2] sm:$0xff]
    %1988 = vrot.lane.b32.xlu0 %v1335, 96
    %v1989 = vpop.permute.xlu0 %1988
    %v1992 = vrot.slane %v1394, 1
    %1993 = vrot.lane.b32.xlu0 %v1992, 32
    %v1994 = vpop.permute.xlu0 %1993
    %v1997 = vrot.slane %v1410, 2
    %1998 = vrot.lane.b32.xlu0 %v1997, 96
    %v1999 = vpop.permute.xlu0 %1998
    %v2001 = vsel %vm1461, %v1989, %v1994
    %vm2002 = vcmask 523264
    %v2003 = vsel %vm2002, %v2001, %v1999
    %v2004 = vld [vmem:[%s10] sm:$0xff]
    %v2005 = vld [vmem:[%s10 + $0x8] sm:$0xff]
    %v2006 = vld [vmem:[%s10 + $0x10] sm:$0xff]
    %v2007 = vld [vmem:[%s10 + $0x18] sm:$0xff]
    %v2008 = vld [vmem:[%s10 + $0x20] sm:$0xff]
    %v2009 = vld [vmem:[%s10 + $0x28] sm:$0xff]
    %v2010 = vld [vmem:[%s10 + $0x30] sm:$0xff]
    %v2011 = vld [vmem:[%s10 + $0x38] sm:$0xff]
    %v2012 = vld [vmem:[%s10 + $0x40] sm:$0xff]
    %v2013 = vld [vmem:[%s10 + $0x48] sm:$0xff]
    %v2014 = vld [vmem:[%s10 + $0x50] sm:$0xff]
    %v2015 = vld [vmem:[%s10 + $0x58] sm:$0xff]
    %v2016 = vld [vmem:[#allocation4] sm:$0x1]
    %vm2017 = vcmask 785408
    %v2019 = vsel %vm2017, %v2003, 0
    %2021 = vmatpush.msra.mxu0 0.0
    %2022 = vmatpush.msra.mxu0 0.0
    %2023 = vmatpush.msra.mxu0 0.0
    %2024 = vmatpush.msra.mxu0 0.0
    %2025 = vmatpush.msra.mxu0 %v2015
    %2026 = vmatpush.msra.mxu0 %v2014
    %2027 = vmatpush.msra.mxu0 %v2013
    %2028 = vmatpush.msra.mxu0 %v2012
    %2029 = vmatpush.msra.mxu0 %v2011
    %2030 = vmatpush.msra.mxu0 %v2010
    %2031 = vmatpush.msra.mxu0 %v2009
    %2032 = vmatpush.msra.mxu0 %v2008
    %2033 = vmatpush.msra.mxu0 %v2007
    %2034 = vmatpush.msra.mxu0 %v2006
    %2035 = vmatpush.msra.mxu0 %v2005
    %2036 = vmatpush.msra.mxu0 %v2004
    %2037 = vmatmul.f32.gmra.mxu0 %v2019
    %v2038 = vpop.f32.mrf.mxu0
    %v2039 = vadd.f32 %v2016, %v2038
    %2040 = vdwg.mxu0
    %vm2041 = vcmask 0
    %2042 = vst.msk [vmem:[#allocation11] sm:$0x1] %vm2041, %v2039
    %v2043 = vld [vmem:[%s5] sm:$0xff]
    %v2044 = vld [vmem:[%s5 + $0x8] sm:$0xff]
    %v2045 = vld [vmem:[%s5 + $0x10] sm:$0xff]
    %v2046 = vld [vmem:[%s5 + $0x18] sm:$0xff]
    %v2047 = vld [vmem:[%s5 + $0x20] sm:$0xff]
    %v2048 = vld [vmem:[%s5 + $0x28] sm:$0xff]
    %v2049 = vld [vmem:[%s5 + $0x30] sm:$0xff]
    %v2050 = vld [vmem:[%s5 + $0x38] sm:$0xff]
    %v2051 = vld [vmem:[%s5 + $0x40] sm:$0xff]
    %v2052 = vld [vmem:[%s5 + $0x48] sm:$0xff]
    %v2053 = vld [vmem:[%s5 + $0x50] sm:$0xff]
    %v2054 = vld [vmem:[%s5 + $0x58] sm:$0xff]
    %2055 = vmatpush.msra.mxu0 0.0
    %2056 = vmatpush.msra.mxu0 0.0
    %2057 = vmatpush.msra.mxu0 0.0
    %2058 = vmatpush.msra.mxu0 0.0
    %2059 = vmatpush.msra.mxu0 %v2054
    %2060 = vmatpush.msra.mxu0 %v2053
    %2061 = vmatpush.msra.mxu0 %v2052
    %2062 = vmatpush.msra.mxu0 %v2051
    %2063 = vmatpush.msra.mxu0 %v2050
    %2064 = vmatpush.msra.mxu0 %v2049
    %2065 = vmatpush.msra.mxu0 %v2048
    %2066 = vmatpush.msra.mxu0 %v2047
    %2067 = vmatpush.msra.mxu0 %v2046
    %2068 = vmatpush.msra.mxu0 %v2045
    %2069 = vmatpush.msra.mxu0 %v2044
    %2070 = vmatpush.msra.mxu0 %v2043
    %2071 = vmatmul.f32.gmra.mxu0 %v2019
    %v2072 = vpop.f32.mrf.mxu0
    %v2073 = vadd.f32 0.0, %v2072
    %2074 = vdwg.mxu0
    %v2075 = vld [vmem:[%s6] sm:$0xff]
    %v2076 = vld [vmem:[%s6 + $0x8] sm:$0xff]
    %v2077 = vld [vmem:[%s6 + $0x10] sm:$0xff]
    %v2078 = vld [vmem:[%s6 + $0x18] sm:$0xff]
    %v2080 = vsel %vm1461, %v1986, 0
    %2082 = vmatpush.msra.mxu0 0.0
    %2083 = vmatpush.msra.mxu0 0.0
    %2084 = vmatpush.msra.mxu0 0.0
    %2085 = vmatpush.msra.mxu0 0.0
    %2086 = vmatpush.msra.mxu0 0.0
    %2087 = vmatpush.msra.mxu0 0.0
    %2088 = vmatpush.msra.mxu0 0.0
    %2089 = vmatpush.msra.mxu0 0.0
    %2090 = vmatpush.msra.mxu0 0.0
    %2091 = vmatpush.msra.mxu0 0.0
    %2092 = vmatpush.msra.mxu0 0.0
    %2093 = vmatpush.msra.mxu0 0.0
    %2094 = vmatpush.msra.mxu0 %v2078
    %2095 = vmatpush.msra.mxu0 %v2077
    %2096 = vmatpush.msra.mxu0 %v2076
    %2097 = vmatpush.msra.mxu0 %v2075
    %2098 = vmatmul.f32.gmra.mxu0 %v2080
    %v2099 = vpop.f32.mrf.mxu0
    %v2100 = vadd.f32 0.0, %v2099
    %2101 = vdwg.mxu0
    %v2102 = vperm.slane %v2073, 0
    %v2103 = vadd.f32 %v2102, %v2100
    %v2104 = vld [vmem:[%s7] sm:$0x1]
    %v2106 = vperm.slane %v2104, 0
    %v2108 = vadd.f32 %v2103, %v2106
    %v2109 = vmax.f32 %v2108, 0.0
    %v2110 = vld [vmem:[%s8] sm:$0xff]
    %v2111 = vld [vmem:[%s8 + $0x8] sm:$0xff]
    %v2112 = vld [vmem:[%s8 + $0x10] sm:$0xff]
    %v2113 = vld [vmem:[%s8 + $0x18] sm:$0xff]
    %v2114 = vld [vmem:[%s8 + $0x20] sm:$0xff]
    %v2115 = vld [vmem:[%s8 + $0x28] sm:$0xff]
    %v2116 = vld [vmem:[%s8 + $0x30] sm:$0x3]
    %v2117 = vld [vmem:[#allocation3] sm:$0x1]
    %v2119 = vperm.slane %v2117, 0
    %vm2121 = vcmask 408576
    %v2123 = vsel %vm2121, %v2109, 0
    %vm2125 = vcmask 1041408
    %v2127 = vsel %vm2125, %v2116, 0
    %2129 = vmatpush.msra.mxu0 0.0
    %2130 = vmatpush.msra.mxu0 0.0
    %2131 = vmatpush.msra.mxu0 0.0
    %2132 = vmatpush.msra.mxu0 0.0
    %2133 = vmatpush.msra.mxu0 0.0
    %2134 = vmatpush.msra.mxu0 0.0
    %2135 = vmatpush.msra.mxu0 0.0
    %2136 = vmatpush.msra.mxu0 0.0
    %2137 = vmatpush.msra.mxu0 0.0
    %2138 = vmatpush.msra.mxu0 %v2127
    %2139 = vmatpush.msra.mxu0 %v2115
    %2140 = vmatpush.msra.mxu0 %v2114
    %2141 = vmatpush.msra.mxu0 %v2113
    %2142 = vmatpush.msra.mxu0 %v2112
    %2143 = vmatpush.msra.mxu0 %v2111
    %2144 = vmatpush.msra.mxu0 %v2110
    %2145 = vmatmul.f32.gmra.mxu0 %v2123
    %v2146 = vpop.f32.mrf.mxu0
    %v2147 = vadd.f32 %v2119, %v2146
    %2148 = vdwg.mxu0
    %v2149 = vlaneseq
    %v2150 = vshrl.u32 %v2149, 7
    %v2151 = vlaneseq
    %v2152 = vand.u32 %v2151, 127
    %vm2153 = vcmp.eq.s32.totalorder %v2150, %v2152
    %v2154 = vsel %vm2153, 1, 0
    %v2155 = vcvt.s32.f32 %v2154
    %2157 = vset.pattern.permute.xlu0 0
    %2158 = vperm.xlu0 %2157, %v2147
    %v2159 = vpop.permute.xlu0 %2158
    %v2161 = vmul.f32 %v2159, %v2155
    %vm2162 = vcmask 64512
    %v2163 = vsel %vm2162, %v2161, 0.0
    %v2164 = vrot.slane %v2163, 4
    %v2165 = vadd.f32 %v2163, %v2164
    %v2166 = vrot.slane %v2165, 2
    %v2167 = vadd.f32 %v2165, %v2166
    %v2168 = vrot.slane %v2167, 1
    %v2169 = vadd.f32 %v2167, %v2168
    %vm2170 = vcmask 57344
    %2171 = vst.msk [vmem:[#allocation10] sm:$0x1] %vm2170, %v2169
    %v2172 = vsel %vm2162, %v2169, -inf
    %2173 = vmax.xlane.f32.xlu0 %v2172
    %v2174 = vpop.xlane.xlu0 %2173
    %v2175 = vsub.f32 %v2169, %v2174
    %v2176 = vmul.f32 %v2175, 1.442695
    %v2177 = vpow.pop %v2176
    %v2178 = vsel %vm2162, %v2177, 0.0
    %2179 = vadd.xlane.f32.xlu0 %v2178
    %v2180 = vpop.xlane.xlu0 %2179
    %v2181 = vrcp.pop %v2180
    %v2182 = vmul.f32 %v2177, %v2181
    %vm2183 = vcmp.le.s32.totalorder %v2150, %v2152
    %v2184 = vsel %vm2183, 1, 0
    %v2185 = vcvt.s32.f32 %v2184
    %v2187 = vsel %vm2162, %v2182, 0
    %2189 = vmatpush.msra.mxu0 0.0
    %2190 = vmatpush.msra.mxu0 0.0
    %2191 = vmatpush.msra.mxu0 0.0
    %2192 = vmatpush.msra.mxu0 0.0
    %2193 = vmatpush.msra.mxu0 0.0
    %2194 = vmatpush.msra.mxu0 0.0
    %2195 = vmatpush.msra.mxu0 0.0
    %2196 = vmatpush.msra.mxu0 0.0
    %2197 = vmatpush.msra.mxu0 0.0
    %2198 = vmatpush.msra.mxu0 0.0
    %2199 = vmatpush.msra.mxu0 0.0
    %2200 = vmatpush.msra.mxu0 0.0
    %2201 = vmatpush.msra.mxu0 0.0
    %2202 = vmatpush.msra.mxu0 0.0
    %2203 = vmatpush.msra.mxu0 0.0
    %2204 = vmatpush.msra.mxu0 %v2185
    %2205 = vmatmul.f32.gmra.mxu0 %v2187
    %v2206 = vpop.f32.mrf.mxu0
    %v2207 = vadd.f32 0.0, %v2206
    %2208 = vdwg.mxu0
    %s2209 = sld [smem:[#allocation5]]
    %v2210 = vstv %s2209
    %vm2211 = vcmp.le.f32.partialorder %v2207, %v2210
    %v2212 = vsel %vm2211, 1, 0
    %v2213 = vsel %vm2170, %v2212, 0
    %v2214 = vand.u32 %v2213, 65535
    %v2215 = vshrl.u32 %v2213, 16
    %v2216 = vcvt.s32.f32 %v2214
    %v2217 = vcvt.s32.f32 %v2215
    %2218 = vadd.xlane.f32.xlu0 %v2216
    %v2219 = vpop.xlane.xlu0 %2218
    %2220 = vadd.xlane.f32.xlu0 %v2217
    %v2221 = vpop.xlane.xlu0 %2220
    %v2222 = vcvt.f32.s32 %v2219
    %v2223 = vcvt.f32.s32 %v2221
    %v2224 = vshll.u32 %v2223, 16
    %v2225 = vadd.s32 %v2224, %v2222
    %v2226 = vrot.slane %v2225, 4
    %v2227 = vadd.s32 %v2225, %v2226
    %v2228 = vrot.slane %v2227, 2
    %v2229 = vadd.s32 %v2227, %v2228
    %v2230 = vrot.slane %v2229, 1
    %v2231 = vadd.s32 %v2229, %v2230
    %s2232 = vtos %v2231
    %p2233 = scmp.lt.s32.totalorder %s2232, 7
    %s2234 = scalar_select %p2233, %s2232, 7
    %s2235 = scalar_lea.smem [#allocation13], 0
    %2236 = sst [smem:[%s2235]] %s2234
    // Predicated region
    $region58: #{tpu_custom_call.1} parent=1 // pred_check
      _
    $region59: #{tpu_custom_call.1} parent=1 // pred_check_branch
      %2238 = sbr.rel (0) target = $region61
    $region60: #{tpu_custom_call.1} parent=1 // pred_region
      %2240 = vsyncadd [#allocation8], 0
      %s2242 = sshll.u32 [#allocation10], 4
      %s2243 = int_to_ptr.vmem [resolvable:$true] %s2242
      %s2244 = sshll.u32 %s13, 4
      %s2245 = int_to_ptr.hbm [resolvable:$true] %s2244
      %2247 = dma.vmem_to_hbm [thread:$0]  %s2243, 16, %s2245, [#allocation8]
    $region61: #{tpu_custom_call.1} parent=1 // pred_fallthru
      _
    // Predicated region
    $region62: #{tpu_custom_call.1} parent=1 // pred_check
      _
    $region63: #{tpu_custom_call.1} parent=1 // pred_check_branch
      %2249 = sbr.rel (0) target = $region65
    $region64: #{tpu_custom_call.1} parent=1 // pred_region
      %2251 = vsyncadd [#allocation12], 0
      %s2253 = sshll.u32 [#allocation11], 4
      %s2254 = int_to_ptr.vmem [resolvable:$true] %s2253
      %s2255 = sshll.u32 %s14, 4
      %s2256 = int_to_ptr.hbm [resolvable:$true] %s2255
      %2258 = dma.vmem_to_hbm [thread:$0]  %s2254, 16, %s2256, [#allocation12]
    $region65: #{tpu_custom_call.1} parent=1 // pred_fallthru
      _
    // Predicated region
    $region66: #{tpu_custom_call.1} parent=1 // pred_check
      _
    $region67: #{tpu_custom_call.1} parent=1 // pred_check_branch
      %2260 = sbr.rel (0) target = $region69
    $region68: #{tpu_custom_call.1} parent=1 // pred_region
      %2262 = vsyncadd [#allocation9], 0
      %s2264 = sshll.u32 %s15, 4
      %s2265 = int_to_ptr.hbm [resolvable:$true] %s2264
      %2267 = dma.smem_to_hbm [#allocation13], 16, %s2265, [#allocation9]
    $region69: #{tpu_custom_call.1} parent=1 // pred_fallthru
      _
    // Predicated region
    $region70: #{tpu_custom_call.1} parent=1 // pred_check
      _
    $region71: #{tpu_custom_call.1} parent=1 // pred_check_branch
      %2269 = sbr.rel (0) target = $region73
    $region72: #{tpu_custom_call.1} parent=1 // pred_region
      %2271 = dma.done [#allocation8], 16
    $region73: #{tpu_custom_call.1} parent=1 // pred_fallthru
      _
    // Predicated region
    $region74: #{tpu_custom_call.1} parent=1 // pred_check
      _
    $region75: #{tpu_custom_call.1} parent=1 // pred_check_branch
      %2273 = sbr.rel (0) target = $region77
    $region76: #{tpu_custom_call.1} parent=1 // pred_region
      %2275 = dma.done [#allocation12], 16
    $region77: #{tpu_custom_call.1} parent=1 // pred_fallthru
      _
    // Predicated region
    $region78: #{tpu_custom_call.1} parent=1 // pred_check
      _
    $region79: #{tpu_custom_call.1} parent=1 // pred_check_branch
      %2277 = sbr.rel (0) target = $region81
    $region80: #{tpu_custom_call.1} parent=1 // pred_region
      %2279 = dma.done [#allocation9], 16
    $region81: #{tpu_custom_call.1} parent=1 // pred_fallthru
      _
    %2280 = sfence
    %2281 = vsyncpa [#allocation7], 1
    %2282 = vsyncpa [#allocation8], 1
    %2283 = vsyncpa [#allocation12], 1
    %2284 = vsyncpa [#allocation9], 1

</llo_original>
